<compile_context>
chip_gen: v7x
topology: tpu7x:2x2x1
jax: 0.10.0
libtpu: 0.0.40
codegen_flags: <defaults>
</compile_context>

<pallas_src>
import functools

import jax
import jax.numpy as jnp
import numpy as np
from jax.experimental import pallas as pl
from jax.experimental.pallas import tpu as pltpu


_VMEM_LIMIT_BYTES = 32 * 1024 * 1024  # explicit scoped-VMEM budget, safe on v5e/v6e/v7x


# ---------------------------------------------------------------------------
# Constant operator construction (numpy, trace-time).
# ---------------------------------------------------------------------------
def _pool_matrices(h, w):
    """4 corner-selection matrices (4, P, Po) for 2x2/stride-2 max-pool in (C, P) layout."""
    ho, wo = h // 2, w // 2
    p_in, p_out = h * w, ho * wo
    pout = np.arange(p_out)
    oy, ox = pout // wo, pout % wo
    mats = []
    for dy in (0, 1):
        for dx in (0, 1):
            src = (2 * oy + dy) * w + (2 * ox + dx)
            m = np.zeros((p_in, p_out), np.float32)
            m[src, pout] = 1.0
            mats.append(m)
    return np.stack(mats)


def _upsample_matrix(hl, wl):
    """(Pl, P) replication matrix for nearest x2 upsample in (C, P) layout."""
    h, w = 2 * hl, 2 * wl
    p_lo, p_hi = hl * wl, h * w
    p = np.arange(p_hi)
    src = (p // w // 2) * wl + (p % w) // 2
    m = np.zeros((p_lo, p_hi), np.float32)
    m[src, p] = 1.0
    return m


def _branch_index(depth):
    """Flattened index of hg[i][j] into the stacked weight arrays."""
    bidx, idx = {}, 0
    for i in range(depth):
        for j in range(4 if i == 0 else 3):
            bidx[(i, j)] = idx
            idx += 1
    return bidx


# ---------------------------------------------------------------------------
# Single fused kernel: one grid step = one image, full hourglass recursion.
# ---------------------------------------------------------------------------
def _hourglass_kernel(depth, num_blocks, bidx, *refs):
    x_ref, w1s, b1s, w2s, b2s = refs[:5]
    pool_refs = refs[5:5 + depth]          # pool_refs[r]: (4, P_r, P_r//4), r=0 is full res
    up_refs = refs[5 + depth:5 + 2 * depth]
    o_ref = refs[5 + 2 * depth]

    def res_chain(x, i, j):
        b = bidx[(i, j)]
        # TODO(synk): for large num_blocks switch to lax.fori_loop(..., unroll=True).
        for k in range(num_blocks):
            h = jnp.maximum(
                jnp.dot(w1s[b, k], x.astype(jnp.bfloat16),
                        preferred_element_type=jnp.float32) + b1s[b, k], 0.0)
            x = jnp.maximum(
                x + jnp.dot(w2s[b, k], h.astype(jnp.bfloat16),
                            preferred_element_type=jnp.float32) + b2s[b, k], 0.0)
        return x

    def maxpool(x, r):
        sel = pool_refs[r]
        out = jnp.dot(x, sel[0], preferred_element_type=jnp.float32)
        for k in range(1, 4):
            out = jnp.maximum(
                out, jnp.dot(x, sel[k], preferred_element_type=jnp.float32))
        return out

    def upsample(x, r):
        return jnp.dot(x, up_refs[r][...], preferred_element_type=jnp.float32)

    def rec(n, x):
        i = n - 1            # PyTorch hg level index
        r = depth - n        # resolution index (0 = full resolution)
        up1 = res_chain(x, i, 0)
        low1 = res_chain(maxpool(x, r), i, 1)
        if n > 1:
            low2 = rec(n - 1, low1)
        else:
            low2 = res_chain(low1, i, 3)
        low3 = res_chain(low2, i, 2)
        return up1 + upsample(low3, r)

    o_ref[0] = rec(depth, x_ref[0].astype(jnp.float32)).astype(o_ref.dtype)


def hourglass_forward(x, params, depth, num_blocks):
    n, c, h, w = x.shape
    assert h % (2 ** depth) == 0 and w % (2 ** depth) == 0, \
        "spatial dims must be divisible by 2**depth"
    p = h * w
    w1s, b1s, w2s, b2s = params
    bidx = _branch_index(depth)

    pool_mats, up_mats = [], []
    hh, ww = h, w
    for _ in range(depth):
        pool_mats.append(jnp.asarray(_pool_matrices(hh, ww)))
        up_mats.append(jnp.asarray(_upsample_matrix(hh // 2, ww // 2)))
        hh //= 2
        ww //= 2

    xr = x.reshape(n, c, p)

    def const_spec(arr):
        nd = arr.ndim
        return pl.BlockSpec(arr.shape, lambda i, _nd=nd: (0,) * _nd)

    in_specs = [pl.BlockSpec((1, c, p), lambda i: (i, 0, 0)),
                const_spec(w1s), const_spec(b1s), const_spec(w2s), const_spec(b2s)]
    in_specs += [const_spec(m) for m in pool_mats]
    in_specs += [const_spec(m) for m in up_mats]

    out = pl.pallas_call(
        functools.partial(_hourglass_kernel, depth, num_blocks, bidx),
        out_shape=jax.ShapeDtypeStruct((n, c, p), x.dtype),
        grid_spec=pltpu.PrefetchScalarGridSpec(
            num_scalar_prefetch=0,
            grid=(n,),
            in_specs=in_specs,
            out_specs=pl.BlockSpec((1, c, p), lambda i: (i, 0, 0)),
        ),
        compiler_params=pltpu.CompilerParams(
            dimension_semantics=("parallel",),
            vmem_limit_bytes=_VMEM_LIMIT_BYTES,
        ),
    )(xr, w1s, b1s, w2s, b2s, *pool_mats, *up_mats)
    return out.reshape(n, c, h, w)


# ---------------------------------------------------------------------------
# Parameter init (weights stacked over all hg[i][j] branches).
# ---------------------------------------------------------------------------
def init_hourglass_params(key, depth, num_blocks, planes, expansion=1):
    c = planes * expansion
    w_scale = 0.5 / np.sqrt(c)
    w1l, b1l, w2l, b2l = [], [], [], []
    for i in range(depth):
        for _ in range(4 if i == 0 else 3):
            key, k1, k2, k3, k4 = jax.random.split(key, 5)
            w1l.append(w_scale * jax.random.normal(k1, (num_blocks, c, c), jnp.float32))
            b1l.append(0.1 * jax.random.normal(k2, (num_blocks, c, 1), jnp.float32))
            w2l.append(w_scale * jax.random.normal(k3, (num_blocks, c, c), jnp.float32))
            b2l.append(0.1 * jax.random.normal(k4, (num_blocks, c, 1), jnp.float32))
    # Channel-mixing weights are bf16 MXU operands; biases stay f32.
    w1s = jnp.stack(w1l).astype(jnp.bfloat16)
    w2s = jnp.stack(w2l).astype(jnp.bfloat16)
    return (w1s, jnp.stack(b1l), w2s, jnp.stack(b2l))


# ---------------------------------------------------------------------------
# Pure-JAX reference of the same forward (same bf16-weight math).
# ---------------------------------------------------------------------------
def _residual_chain_ref(x, w1, b1, w2, b2):
    n, c, h, w = x.shape
    xr = x.reshape(n, c, h * w)
    for k in range(w1.shape[0]):
        hid = jax.nn.relu(
            jnp.einsum("oc,ncp->nop", w1[k], xr.astype(jnp.bfloat16),
                       preferred_element_type=jnp.float32) + b1[k][None])
        xr = jax.nn.relu(
            xr + jnp.einsum("oc,ncp->nop", w2[k], hid.astype(jnp.bfloat16),
                            preferred_element_type=jnp.float32) + b2[k][None])
    return xr.reshape(n, c, h, w)


def _maxpool_ref(x):
    n, c, h, w = x.shape
    return x.reshape(n, c, h // 2, 2, w // 2, 2).max(axis=(3, 5))


def _upsample_ref(x):
    return jnp.repeat(jnp.repeat(x, 2, axis=2), 2, axis=3)


def hourglass_ref(x, params, depth):
    w1s, b1s, w2s, b2s = params
    bidx = _branch_index(depth)

    def chain(x, i, j):
        b = bidx[(i, j)]
        return _residual_chain_ref(x, w1s[b], b1s[b], w2s[b], b2s[b])

    def rec(n, x):
        i = n - 1
        up1 = chain(x, i, 0)
        low1 = chain(_maxpool_ref(x), i, 1)
        low2 = rec(n - 1, low1) if n > 1 else chain(low1, i, 3)
        low3 = chain(low2, i, 2)
        return up1 + _upsample_ref(low3)

    return rec(depth, x)


if __name__ == "__main__":
    key = jax.random.PRNGKey(0)
    batch, planes, depth, num_blocks = 2, 16, 2, 1
    height = width = 16

    kx, kp = jax.random.split(key)
    x = jax.random.normal(kx, (batch, planes, height, width), dtype=jnp.float32)
    params = init_hourglass_params(kp, depth, num_blocks, planes)

    fwd = jax.jit(functools.partial(hourglass_forward, depth=depth, num_blocks=num_blocks))
    out = jax.block_until_ready(fwd(x, params))

    ref = hourglass_ref(x, params, depth)
    assert out.shape == (batch, planes, height, width), out.shape
    max_err = float(jnp.max(jnp.abs(out - ref)))
    assert jnp.allclose(out, ref, atol=2e-2, rtol=2e-2), f"max_err={max_err}"
    print("KERNEL_OK")
</pallas_src>

<mosaic_0001>
module attributes {stable_mosaic.version = 11 : i64} {
  func.func @_hourglass_kernel(%arg0: i32, %arg1: memref<1x16x256xf32, #tpu.memory_space<vmem>>, %arg2: memref<7x1x16x16xbf16, #tpu.memory_space<vmem>>, %arg3: memref<7x1x16x1xf32, #tpu.memory_space<vmem>>, %arg4: memref<7x1x16x16xbf16, #tpu.memory_space<vmem>>, %arg5: memref<7x1x16x1xf32, #tpu.memory_space<vmem>>, %arg6: memref<4x256x64xf32, #tpu.memory_space<vmem>>, %arg7: memref<4x64x16xf32, #tpu.memory_space<vmem>>, %arg8: memref<64x256xf32, #tpu.memory_space<vmem>>, %arg9: memref<16x64xf32, #tpu.memory_space<vmem>>, %arg10: memref<1x16x256xf32, #tpu.memory_space<vmem>>) attributes {dimension_semantics = [#tpu.dimension_semantics<parallel>], iteration_bounds = array<i64: 2>, scalar_prefetch = 0 : i64, scratch_operands = 0 : i64, tpu.core_type = #tpu.core_type<tc>, window_params = [{transform_indices = @transform_0, window_bounds = array<i64: 1, 16, 256>}, {pipeline_mode = #tpu.pipeline_mode<synchronous>, transform_indices = @transform_1, window_bounds = array<i64: 7, 1, 16, 16>}, {pipeline_mode = #tpu.pipeline_mode<synchronous>, transform_indices = @transform_2, window_bounds = array<i64: 7, 1, 16, 1>}, {pipeline_mode = #tpu.pipeline_mode<synchronous>, transform_indices = @transform_3, window_bounds = array<i64: 7, 1, 16, 16>}, {pipeline_mode = #tpu.pipeline_mode<synchronous>, transform_indices = @transform_4, window_bounds = array<i64: 7, 1, 16, 1>}, {pipeline_mode = #tpu.pipeline_mode<synchronous>, transform_indices = @transform_5, window_bounds = array<i64: 4, 256, 64>}, {pipeline_mode = #tpu.pipeline_mode<synchronous>, transform_indices = @transform_6, window_bounds = array<i64: 4, 64, 16>}, {pipeline_mode = #tpu.pipeline_mode<synchronous>, transform_indices = @transform_7, window_bounds = array<i64: 64, 256>}, {pipeline_mode = #tpu.pipeline_mode<synchronous>, transform_indices = @transform_8, window_bounds = array<i64: 16, 64>}, {transform_indices = @transform_9, window_bounds = array<i64: 1, 16, 256>}]} {
    %c0 = arith.constant 0 : index
    %c0_0 = arith.constant 0 : index
    %c0_1 = arith.constant 0 : index
    %0 = vector.load %arg1[%c0, %c0_0, %c0_1] : memref<1x16x256xf32, #tpu.memory_space<vmem>>, vector<1x16x256xf32>
    %1 = vector.shape_cast %0 : vector<1x16x256xf32> to vector<16x256xf32>
    %c4 = arith.constant 4 : index
    %c0_2 = arith.constant 0 : index
    %c0_3 = arith.constant 0 : index
    %c0_4 = arith.constant 0 : index
    %2 = vector.load %arg2[%c4, %c0_2, %c0_3, %c0_4] : memref<7x1x16x16xbf16, #tpu.memory_space<vmem>>, vector<1x1x16x16xbf16>
    %3 = vector.shape_cast %2 : vector<1x1x16x16xbf16> to vector<16x16xbf16>
    %4 = arith.truncf %1 : vector<16x256xf32> to vector<16x256xbf16>
    %cst = arith.constant dense<0.000000e+00> : vector<16x256xf32>
    %5 = tpu.matmul %3, %4, %cst {dimension_numbers = #tpu.dot_dimension_numbers<[1], [0], [0], [1], [0, 0, 1, 1], [], []>} : vector<16x16xbf16>, vector<16x256xbf16>, vector<16x256xf32> -> vector<16x256xf32>
    %c4_5 = arith.constant 4 : index
    %c0_6 = arith.constant 0 : index
    %c0_7 = arith.constant 0 : index
    %c0_8 = arith.constant 0 : index
    %6 = vector.load %arg3[%c4_5, %c0_6, %c0_7, %c0_8] : memref<7x1x16x1xf32, #tpu.memory_space<vmem>>, vector<1x1x16x1xf32>
    %7 = vector.shape_cast %6 : vector<1x1x16x1xf32> to vector<16x1xf32>
    %8 = vector.broadcast %7 : vector<16x1xf32> to vector<16x256xf32>
    %9 = arith.addf %5, %8 : vector<16x256xf32>
    %cst_9 = arith.constant 0.000000e+00 : f32
    %10 = vector.broadcast %cst_9 : f32 to vector<16x256xf32>
    %11 = arith.maximumf %9, %10 : vector<16x256xf32>
    %c4_10 = arith.constant 4 : index
    %c0_11 = arith.constant 0 : index
    %c0_12 = arith.constant 0 : index
    %c0_13 = arith.constant 0 : index
    %12 = vector.load %arg4[%c4_10, %c0_11, %c0_12, %c0_13] : memref<7x1x16x16xbf16, #tpu.memory_space<vmem>>, vector<1x1x16x16xbf16>
    %13 = vector.shape_cast %12 : vector<1x1x16x16xbf16> to vector<16x16xbf16>
    %14 = arith.truncf %11 : vector<16x256xf32> to vector<16x256xbf16>
    %cst_14 = arith.constant dense<0.000000e+00> : vector<16x256xf32>
    %15 = tpu.matmul %13, %14, %cst_14 {dimension_numbers = #tpu.dot_dimension_numbers<[1], [0], [0], [1], [0, 0, 1, 1], [], []>} : vector<16x16xbf16>, vector<16x256xbf16>, vector<16x256xf32> -> vector<16x256xf32>
    %16 = arith.addf %1, %15 : vector<16x256xf32>
    %c4_15 = arith.constant 4 : index
    %c0_16 = arith.constant 0 : index
    %c0_17 = arith.constant 0 : index
    %c0_18 = arith.constant 0 : index
    %17 = vector.load %arg5[%c4_15, %c0_16, %c0_17, %c0_18] : memref<7x1x16x1xf32, #tpu.memory_space<vmem>>, vector<1x1x16x1xf32>
    %18 = vector.shape_cast %17 : vector<1x1x16x1xf32> to vector<16x1xf32>
    %19 = vector.broadcast %18 : vector<16x1xf32> to vector<16x256xf32>
    %20 = arith.addf %16, %19 : vector<16x256xf32>
    %cst_19 = arith.constant 0.000000e+00 : f32
    %21 = vector.broadcast %cst_19 : f32 to vector<16x256xf32>
    %22 = arith.maximumf %20, %21 : vector<16x256xf32>
    %c0_20 = arith.constant 0 : index
    %c0_21 = arith.constant 0 : index
    %c0_22 = arith.constant 0 : index
    %23 = vector.load %arg6[%c0_20, %c0_21, %c0_22] : memref<4x256x64xf32, #tpu.memory_space<vmem>>, vector<1x256x64xf32>
    %24 = vector.shape_cast %23 : vector<1x256x64xf32> to vector<256x64xf32>
    %cst_23 = arith.constant dense<0.000000e+00> : vector<16x64xf32>
    %25 = tpu.matmul %1, %24, %cst_23 {dimension_numbers = #tpu.dot_dimension_numbers<[1], [0], [0], [1], [0, 0, 1, 1], [], []>} : vector<16x256xf32>, vector<256x64xf32>, vector<16x64xf32> -> vector<16x64xf32>
    %c1 = arith.constant 1 : index
    %c0_24 = arith.constant 0 : index
    %c0_25 = arith.constant 0 : index
    %26 = vector.load %arg6[%c1, %c0_24, %c0_25] : memref<4x256x64xf32, #tpu.memory_space<vmem>>, vector<1x256x64xf32>
    %27 = vector.shape_cast %26 : vector<1x256x64xf32> to vector<256x64xf32>
    %cst_26 = arith.constant dense<0.000000e+00> : vector<16x64xf32>
    %28 = tpu.matmul %1, %27, %cst_26 {dimension_numbers = #tpu.dot_dimension_numbers<[1], [0], [0], [1], [0, 0, 1, 1], [], []>} : vector<16x256xf32>, vector<256x64xf32>, vector<16x64xf32> -> vector<16x64xf32>
    %29 = arith.maximumf %25, %28 : vector<16x64xf32>
    %c2 = arith.constant 2 : index
    %c0_27 = arith.constant 0 : index
    %c0_28 = arith.constant 0 : index
    %30 = vector.load %arg6[%c2, %c0_27, %c0_28] : memref<4x256x64xf32, #tpu.memory_space<vmem>>, vector<1x256x64xf32>
    %31 = vector.shape_cast %30 : vector<1x256x64xf32> to vector<256x64xf32>
    %cst_29 = arith.constant dense<0.000000e+00> : vector<16x64xf32>
    %32 = tpu.matmul %1, %31, %cst_29 {dimension_numbers = #tpu.dot_dimension_numbers<[1], [0], [0], [1], [0, 0, 1, 1], [], []>} : vector<16x256xf32>, vector<256x64xf32>, vector<16x64xf32> -> vector<16x64xf32>
    %33 = arith.maximumf %29, %32 : vector<16x64xf32>
    %c3 = arith.constant 3 : index
    %c0_30 = arith.constant 0 : index
    %c0_31 = arith.constant 0 : index
    %34 = vector.load %arg6[%c3, %c0_30, %c0_31] : memref<4x256x64xf32, #tpu.memory_space<vmem>>, vector<1x256x64xf32>
    %35 = vector.shape_cast %34 : vector<1x256x64xf32> to vector<256x64xf32>
    %cst_32 = arith.constant dense<0.000000e+00> : vector<16x64xf32>
    %36 = tpu.matmul %1, %35, %cst_32 {dimension_numbers = #tpu.dot_dimension_numbers<[1], [0], [0], [1], [0, 0, 1, 1], [], []>} : vector<16x256xf32>, vector<256x64xf32>, vector<16x64xf32> -> vector<16x64xf32>
    %37 = arith.maximumf %33, %36 : vector<16x64xf32>
    %c5 = arith.constant 5 : index
    %c0_33 = arith.constant 0 : index
    %c0_34 = arith.constant 0 : index
    %c0_35 = arith.constant 0 : index
    %38 = vector.load %arg2[%c5, %c0_33, %c0_34, %c0_35] : memref<7x1x16x16xbf16, #tpu.memory_space<vmem>>, vector<1x1x16x16xbf16>
    %39 = vector.shape_cast %38 : vector<1x1x16x16xbf16> to vector<16x16xbf16>
    %40 = arith.truncf %37 : vector<16x64xf32> to vector<16x64xbf16>
    %cst_36 = arith.constant dense<0.000000e+00> : vector<16x64xf32>
    %41 = tpu.matmul %39, %40, %cst_36 {dimension_numbers = #tpu.dot_dimension_numbers<[1], [0], [0], [1], [0, 0, 1, 1], [], []>} : vector<16x16xbf16>, vector<16x64xbf16>, vector<16x64xf32> -> vector<16x64xf32>
    %c5_37 = arith.constant 5 : index
    %c0_38 = arith.constant 0 : index
    %c0_39 = arith.constant 0 : index
    %c0_40 = arith.constant 0 : index
    %42 = vector.load %arg3[%c5_37, %c0_38, %c0_39, %c0_40] : memref<7x1x16x1xf32, #tpu.memory_space<vmem>>, vector<1x1x16x1xf32>
    %43 = vector.shape_cast %42 : vector<1x1x16x1xf32> to vector<16x1xf32>
    %44 = vector.broadcast %43 : vector<16x1xf32> to vector<16x64xf32>
    %45 = arith.addf %41, %44 : vector<16x64xf32>
    %cst_41 = arith.constant 0.000000e+00 : f32
    %46 = vector.broadcast %cst_41 : f32 to vector<16x64xf32>
    %47 = arith.maximumf %45, %46 : vector<16x64xf32>
    %c5_42 = arith.constant 5 : index
    %c0_43 = arith.constant 0 : index
    %c0_44 = arith.constant 0 : index
    %c0_45 = arith.constant 0 : index
    %48 = vector.load %arg4[%c5_42, %c0_43, %c0_44, %c0_45] : memref<7x1x16x16xbf16, #tpu.memory_space<vmem>>, vector<1x1x16x16xbf16>
    %49 = vector.shape_cast %48 : vector<1x1x16x16xbf16> to vector<16x16xbf16>
    %50 = arith.truncf %47 : vector<16x64xf32> to vector<16x64xbf16>
    %cst_46 = arith.constant dense<0.000000e+00> : vector<16x64xf32>
    %51 = tpu.matmul %49, %50, %cst_46 {dimension_numbers = #tpu.dot_dimension_numbers<[1], [0], [0], [1], [0, 0, 1, 1], [], []>} : vector<16x16xbf16>, vector<16x64xbf16>, vector<16x64xf32> -> vector<16x64xf32>
    %52 = arith.addf %37, %51 : vector<16x64xf32>
    %c5_47 = arith.constant 5 : index
    %c0_48 = arith.constant 0 : index
    %c0_49 = arith.constant 0 : index
    %c0_50 = arith.constant 0 : index
    %53 = vector.load %arg5[%c5_47, %c0_48, %c0_49, %c0_50] : memref<7x1x16x1xf32, #tpu.memory_space<vmem>>, vector<1x1x16x1xf32>
    %54 = vector.shape_cast %53 : vector<1x1x16x1xf32> to vector<16x1xf32>
    %55 = vector.broadcast %54 : vector<16x1xf32> to vector<16x64xf32>
    %56 = arith.addf %52, %55 : vector<16x64xf32>
    %cst_51 = arith.constant 0.000000e+00 : f32
    %57 = vector.broadcast %cst_51 : f32 to vector<16x64xf32>
    %58 = arith.maximumf %56, %57 : vector<16x64xf32>
    %c0_52 = arith.constant 0 : index
    %c0_53 = arith.constant 0 : index
    %c0_54 = arith.constant 0 : index
    %c0_55 = arith.constant 0 : index
    %59 = vector.load %arg2[%c0_52, %c0_53, %c0_54, %c0_55] : memref<7x1x16x16xbf16, #tpu.memory_space<vmem>>, vector<1x1x16x16xbf16>
    %60 = vector.shape_cast %59 : vector<1x1x16x16xbf16> to vector<16x16xbf16>
    %61 = arith.truncf %58 : vector<16x64xf32> to vector<16x64xbf16>
    %cst_56 = arith.constant dense<0.000000e+00> : vector<16x64xf32>
    %62 = tpu.matmul %60, %61, %cst_56 {dimension_numbers = #tpu.dot_dimension_numbers<[1], [0], [0], [1], [0, 0, 1, 1], [], []>} : vector<16x16xbf16>, vector<16x64xbf16>, vector<16x64xf32> -> vector<16x64xf32>
    %c0_57 = arith.constant 0 : index
    %c0_58 = arith.constant 0 : index
    %c0_59 = arith.constant 0 : index
    %c0_60 = arith.constant 0 : index
    %63 = vector.load %arg3[%c0_57, %c0_58, %c0_59, %c0_60] : memref<7x1x16x1xf32, #tpu.memory_space<vmem>>, vector<1x1x16x1xf32>
    %64 = vector.shape_cast %63 : vector<1x1x16x1xf32> to vector<16x1xf32>
    %65 = vector.broadcast %64 : vector<16x1xf32> to vector<16x64xf32>
    %66 = arith.addf %62, %65 : vector<16x64xf32>
    %cst_61 = arith.constant 0.000000e+00 : f32
    %67 = vector.broadcast %cst_61 : f32 to vector<16x64xf32>
    %68 = arith.maximumf %66, %67 : vector<16x64xf32>
    %c0_62 = arith.constant 0 : index
    %c0_63 = arith.constant 0 : index
    %c0_64 = arith.constant 0 : index
    %c0_65 = arith.constant 0 : index
    %69 = vector.load %arg4[%c0_62, %c0_63, %c0_64, %c0_65] : memref<7x1x16x16xbf16, #tpu.memory_space<vmem>>, vector<1x1x16x16xbf16>
    %70 = vector.shape_cast %69 : vector<1x1x16x16xbf16> to vector<16x16xbf16>
    %71 = arith.truncf %68 : vector<16x64xf32> to vector<16x64xbf16>
    %cst_66 = arith.constant dense<0.000000e+00> : vector<16x64xf32>
    %72 = tpu.matmul %70, %71, %cst_66 {dimension_numbers = #tpu.dot_dimension_numbers<[1], [0], [0], [1], [0, 0, 1, 1], [], []>} : vector<16x16xbf16>, vector<16x64xbf16>, vector<16x64xf32> -> vector<16x64xf32>
    %73 = arith.addf %58, %72 : vector<16x64xf32>
    %c0_67 = arith.constant 0 : index
    %c0_68 = arith.constant 0 : index
    %c0_69 = arith.constant 0 : index
    %c0_70 = arith.constant 0 : index
    %74 = vector.load %arg5[%c0_67, %c0_68, %c0_69, %c0_70] : memref<7x1x16x1xf32, #tpu.memory_space<vmem>>, vector<1x1x16x1xf32>
    %75 = vector.shape_cast %74 : vector<1x1x16x1xf32> to vector<16x1xf32>
    %76 = vector.broadcast %75 : vector<16x1xf32> to vector<16x64xf32>
    %77 = arith.addf %73, %76 : vector<16x64xf32>
    %cst_71 = arith.constant 0.000000e+00 : f32
    %78 = vector.broadcast %cst_71 : f32 to vector<16x64xf32>
    %79 = arith.maximumf %77, %78 : vector<16x64xf32>
    %c0_72 = arith.constant 0 : index
    %c0_73 = arith.constant 0 : index
    %c0_74 = arith.constant 0 : index
    %80 = vector.load %arg7[%c0_72, %c0_73, %c0_74] : memref<4x64x16xf32, #tpu.memory_space<vmem>>, vector<1x64x16xf32>
    %81 = vector.shape_cast %80 : vector<1x64x16xf32> to vector<64x16xf32>
    %cst_75 = arith.constant dense<0.000000e+00> : vector<16x16xf32>
    %82 = tpu.matmul %58, %81, %cst_75 {dimension_numbers = #tpu.dot_dimension_numbers<[1], [0], [0], [1], [0, 0, 1, 1], [], []>} : vector<16x64xf32>, vector<64x16xf32>, vector<16x16xf32> -> vector<16x16xf32>
    %c1_76 = arith.constant 1 : index
    %c0_77 = arith.constant 0 : index
    %c0_78 = arith.constant 0 : index
    %83 = vector.load %arg7[%c1_76, %c0_77, %c0_78] : memref<4x64x16xf32, #tpu.memory_space<vmem>>, vector<1x64x16xf32>
    %84 = vector.shape_cast %83 : vector<1x64x16xf32> to vector<64x16xf32>
    %cst_79 = arith.constant dense<0.000000e+00> : vector<16x16xf32>
    %85 = tpu.matmul %58, %84, %cst_79 {dimension_numbers = #tpu.dot_dimension_numbers<[1], [0], [0], [1], [0, 0, 1, 1], [], []>} : vector<16x64xf32>, vector<64x16xf32>, vector<16x16xf32> -> vector<16x16xf32>
    %86 = arith.maximumf %82, %85 : vector<16x16xf32>
    %c2_80 = arith.constant 2 : index
    %c0_81 = arith.constant 0 : index
    %c0_82 = arith.constant 0 : index
    %87 = vector.load %arg7[%c2_80, %c0_81, %c0_82] : memref<4x64x16xf32, #tpu.memory_space<vmem>>, vector<1x64x16xf32>
    %88 = vector.shape_cast %87 : vector<1x64x16xf32> to vector<64x16xf32>
    %cst_83 = arith.constant dense<0.000000e+00> : vector<16x16xf32>
    %89 = tpu.matmul %58, %88, %cst_83 {dimension_numbers = #tpu.dot_dimension_numbers<[1], [0], [0], [1], [0, 0, 1, 1], [], []>} : vector<16x64xf32>, vector<64x16xf32>, vector<16x16xf32> -> vector<16x16xf32>
    %90 = arith.maximumf %86, %89 : vector<16x16xf32>
    %c3_84 = arith.constant 3 : index
    %c0_85 = arith.constant 0 : index
    %c0_86 = arith.constant 0 : index
    %91 = vector.load %arg7[%c3_84, %c0_85, %c0_86] : memref<4x64x16xf32, #tpu.memory_space<vmem>>, vector<1x64x16xf32>
    %92 = vector.shape_cast %91 : vector<1x64x16xf32> to vector<64x16xf32>
    %cst_87 = arith.constant dense<0.000000e+00> : vector<16x16xf32>
    %93 = tpu.matmul %58, %92, %cst_87 {dimension_numbers = #tpu.dot_dimension_numbers<[1], [0], [0], [1], [0, 0, 1, 1], [], []>} : vector<16x64xf32>, vector<64x16xf32>, vector<16x16xf32> -> vector<16x16xf32>
    %94 = arith.maximumf %90, %93 : vector<16x16xf32>
    %c1_88 = arith.constant 1 : index
    %c0_89 = arith.constant 0 : index
    %c0_90 = arith.constant 0 : index
    %c0_91 = arith.constant 0 : index
    %95 = vector.load %arg2[%c1_88, %c0_89, %c0_90, %c0_91] : memref<7x1x16x16xbf16, #tpu.memory_space<vmem>>, vector<1x1x16x16xbf16>
    %96 = vector.shape_cast %95 : vector<1x1x16x16xbf16> to vector<16x16xbf16>
    %97 = arith.truncf %94 : vector<16x16xf32> to vector<16x16xbf16>
    %cst_92 = arith.constant dense<0.000000e+00> : vector<16x16xf32>
    %98 = tpu.matmul %96, %97, %cst_92 {dimension_numbers = #tpu.dot_dimension_numbers<[1], [0], [0], [1], [0, 0, 1, 1], [], []>} : vector<16x16xbf16>, vector<16x16xbf16>, vector<16x16xf32> -> vector<16x16xf32>
    %c1_93 = arith.constant 1 : index
    %c0_94 = arith.constant 0 : index
    %c0_95 = arith.constant 0 : index
    %c0_96 = arith.constant 0 : index
    %99 = vector.load %arg3[%c1_93, %c0_94, %c0_95, %c0_96] : memref<7x1x16x1xf32, #tpu.memory_space<vmem>>, vector<1x1x16x1xf32>
    %100 = vector.shape_cast %99 : vector<1x1x16x1xf32> to vector<16x1xf32>
    %101 = vector.broadcast %100 : vector<16x1xf32> to vector<16x16xf32>
    %102 = arith.addf %98, %101 : vector<16x16xf32>
    %cst_97 = arith.constant 0.000000e+00 : f32
    %103 = vector.broadcast %cst_97 : f32 to vector<16x16xf32>
    %104 = arith.maximumf %102, %103 : vector<16x16xf32>
    %c1_98 = arith.constant 1 : index
    %c0_99 = arith.constant 0 : index
    %c0_100 = arith.constant 0 : index
    %c0_101 = arith.constant 0 : index
    %105 = vector.load %arg4[%c1_98, %c0_99, %c0_100, %c0_101] : memref<7x1x16x16xbf16, #tpu.memory_space<vmem>>, vector<1x1x16x16xbf16>
    %106 = vector.shape_cast %105 : vector<1x1x16x16xbf16> to vector<16x16xbf16>
    %107 = arith.truncf %104 : vector<16x16xf32> to vector<16x16xbf16>
    %cst_102 = arith.constant dense<0.000000e+00> : vector<16x16xf32>
    %108 = tpu.matmul %106, %107, %cst_102 {dimension_numbers = #tpu.dot_dimension_numbers<[1], [0], [0], [1], [0, 0, 1, 1], [], []>} : vector<16x16xbf16>, vector<16x16xbf16>, vector<16x16xf32> -> vector<16x16xf32>
    %109 = arith.addf %94, %108 : vector<16x16xf32>
    %c1_103 = arith.constant 1 : index
    %c0_104 = arith.constant 0 : index
    %c0_105 = arith.constant 0 : index
    %c0_106 = arith.constant 0 : index
    %110 = vector.load %arg5[%c1_103, %c0_104, %c0_105, %c0_106] : memref<7x1x16x1xf32, #tpu.memory_space<vmem>>, vector<1x1x16x1xf32>
    %111 = vector.shape_cast %110 : vector<1x1x16x1xf32> to vector<16x1xf32>
    %112 = vector.broadcast %111 : vector<16x1xf32> to vector<16x16xf32>
    %113 = arith.addf %109, %112 : vector<16x16xf32>
    %cst_107 = arith.constant 0.000000e+00 : f32
    %114 = vector.broadcast %cst_107 : f32 to vector<16x16xf32>
    %115 = arith.maximumf %113, %114 : vector<16x16xf32>
    %c3_108 = arith.constant 3 : index
    %c0_109 = arith.constant 0 : index
    %c0_110 = arith.constant 0 : index
    %c0_111 = arith.constant 0 : index
    %116 = vector.load %arg2[%c3_108, %c0_109, %c0_110, %c0_111] : memref<7x1x16x16xbf16, #tpu.memory_space<vmem>>, vector<1x1x16x16xbf16>
    %117 = vector.shape_cast %116 : vector<1x1x16x16xbf16> to vector<16x16xbf16>
    %118 = arith.truncf %115 : vector<16x16xf32> to vector<16x16xbf16>
    %cst_112 = arith.constant dense<0.000000e+00> : vector<16x16xf32>
    %119 = tpu.matmul %117, %118, %cst_112 {dimension_numbers = #tpu.dot_dimension_numbers<[1], [0], [0], [1], [0, 0, 1, 1], [], []>} : vector<16x16xbf16>, vector<16x16xbf16>, vector<16x16xf32> -> vector<16x16xf32>
    %c3_113 = arith.constant 3 : index
    %c0_114 = arith.constant 0 : index
    %c0_115 = arith.constant 0 : index
    %c0_116 = arith.constant 0 : index
    %120 = vector.load %arg3[%c3_113, %c0_114, %c0_115, %c0_116] : memref<7x1x16x1xf32, #tpu.memory_space<vmem>>, vector<1x1x16x1xf32>
    %121 = vector.shape_cast %120 : vector<1x1x16x1xf32> to vector<16x1xf32>
    %122 = vector.broadcast %121 : vector<16x1xf32> to vector<16x16xf32>
    %123 = arith.addf %119, %122 : vector<16x16xf32>
    %cst_117 = arith.constant 0.000000e+00 : f32
    %124 = vector.broadcast %cst_117 : f32 to vector<16x16xf32>
    %125 = arith.maximumf %123, %124 : vector<16x16xf32>
    %c3_118 = arith.constant 3 : index
    %c0_119 = arith.constant 0 : index
    %c0_120 = arith.constant 0 : index
    %c0_121 = arith.constant 0 : index
    %126 = vector.load %arg4[%c3_118, %c0_119, %c0_120, %c0_121] : memref<7x1x16x16xbf16, #tpu.memory_space<vmem>>, vector<1x1x16x16xbf16>
    %127 = vector.shape_cast %126 : vector<1x1x16x16xbf16> to vector<16x16xbf16>
    %128 = arith.truncf %125 : vector<16x16xf32> to vector<16x16xbf16>
    %cst_122 = arith.constant dense<0.000000e+00> : vector<16x16xf32>
    %129 = tpu.matmul %127, %128, %cst_122 {dimension_numbers = #tpu.dot_dimension_numbers<[1], [0], [0], [1], [0, 0, 1, 1], [], []>} : vector<16x16xbf16>, vector<16x16xbf16>, vector<16x16xf32> -> vector<16x16xf32>
    %130 = arith.addf %115, %129 : vector<16x16xf32>
    %c3_123 = arith.constant 3 : index
    %c0_124 = arith.constant 0 : index
    %c0_125 = arith.constant 0 : index
    %c0_126 = arith.constant 0 : index
    %131 = vector.load %arg5[%c3_123, %c0_124, %c0_125, %c0_126] : memref<7x1x16x1xf32, #tpu.memory_space<vmem>>, vector<1x1x16x1xf32>
    %132 = vector.shape_cast %131 : vector<1x1x16x1xf32> to vector<16x1xf32>
    %133 = vector.broadcast %132 : vector<16x1xf32> to vector<16x16xf32>
    %134 = arith.addf %130, %133 : vector<16x16xf32>
    %cst_127 = arith.constant 0.000000e+00 : f32
    %135 = vector.broadcast %cst_127 : f32 to vector<16x16xf32>
    %136 = arith.maximumf %134, %135 : vector<16x16xf32>
    %c2_128 = arith.constant 2 : index
    %c0_129 = arith.constant 0 : index
    %c0_130 = arith.constant 0 : index
    %c0_131 = arith.constant 0 : index
    %137 = vector.load %arg2[%c2_128, %c0_129, %c0_130, %c0_131] : memref<7x1x16x16xbf16, #tpu.memory_space<vmem>>, vector<1x1x16x16xbf16>
    %138 = vector.shape_cast %137 : vector<1x1x16x16xbf16> to vector<16x16xbf16>
    %139 = arith.truncf %136 : vector<16x16xf32> to vector<16x16xbf16>
    %cst_132 = arith.constant dense<0.000000e+00> : vector<16x16xf32>
    %140 = tpu.matmul %138, %139, %cst_132 {dimension_numbers = #tpu.dot_dimension_numbers<[1], [0], [0], [1], [0, 0, 1, 1], [], []>} : vector<16x16xbf16>, vector<16x16xbf16>, vector<16x16xf32> -> vector<16x16xf32>
    %c2_133 = arith.constant 2 : index
    %c0_134 = arith.constant 0 : index
    %c0_135 = arith.constant 0 : index
    %c0_136 = arith.constant 0 : index
    %141 = vector.load %arg3[%c2_133, %c0_134, %c0_135, %c0_136] : memref<7x1x16x1xf32, #tpu.memory_space<vmem>>, vector<1x1x16x1xf32>
    %142 = vector.shape_cast %141 : vector<1x1x16x1xf32> to vector<16x1xf32>
    %143 = vector.broadcast %142 : vector<16x1xf32> to vector<16x16xf32>
    %144 = arith.addf %140, %143 : vector<16x16xf32>
    %cst_137 = arith.constant 0.000000e+00 : f32
    %145 = vector.broadcast %cst_137 : f32 to vector<16x16xf32>
    %146 = arith.maximumf %144, %145 : vector<16x16xf32>
    %c2_138 = arith.constant 2 : index
    %c0_139 = arith.constant 0 : index
    %c0_140 = arith.constant 0 : index
    %c0_141 = arith.constant 0 : index
    %147 = vector.load %arg4[%c2_138, %c0_139, %c0_140, %c0_141] : memref<7x1x16x16xbf16, #tpu.memory_space<vmem>>, vector<1x1x16x16xbf16>
    %148 = vector.shape_cast %147 : vector<1x1x16x16xbf16> to vector<16x16xbf16>
    %149 = arith.truncf %146 : vector<16x16xf32> to vector<16x16xbf16>
    %cst_142 = arith.constant dense<0.000000e+00> : vector<16x16xf32>
    %150 = tpu.matmul %148, %149, %cst_142 {dimension_numbers = #tpu.dot_dimension_numbers<[1], [0], [0], [1], [0, 0, 1, 1], [], []>} : vector<16x16xbf16>, vector<16x16xbf16>, vector<16x16xf32> -> vector<16x16xf32>
    %151 = arith.addf %136, %150 : vector<16x16xf32>
    %c2_143 = arith.constant 2 : index
    %c0_144 = arith.constant 0 : index
    %c0_145 = arith.constant 0 : index
    %c0_146 = arith.constant 0 : index
    %152 = vector.load %arg5[%c2_143, %c0_144, %c0_145, %c0_146] : memref<7x1x16x1xf32, #tpu.memory_space<vmem>>, vector<1x1x16x1xf32>
    %153 = vector.shape_cast %152 : vector<1x1x16x1xf32> to vector<16x1xf32>
    %154 = vector.broadcast %153 : vector<16x1xf32> to vector<16x16xf32>
    %155 = arith.addf %151, %154 : vector<16x16xf32>
    %cst_147 = arith.constant 0.000000e+00 : f32
    %156 = vector.broadcast %cst_147 : f32 to vector<16x16xf32>
    %157 = arith.maximumf %155, %156 : vector<16x16xf32>
    %c0_148 = arith.constant 0 : index
    %c0_149 = arith.constant 0 : index
    %158 = vector.load %arg9[%c0_148, %c0_149] : memref<16x64xf32, #tpu.memory_space<vmem>>, vector<16x64xf32>
    %cst_150 = arith.constant dense<0.000000e+00> : vector<16x64xf32>
    %159 = tpu.matmul %157, %158, %cst_150 {dimension_numbers = #tpu.dot_dimension_numbers<[1], [0], [0], [1], [0, 0, 1, 1], [], []>} : vector<16x16xf32>, vector<16x64xf32>, vector<16x64xf32> -> vector<16x64xf32>
    %160 = arith.addf %79, %159 : vector<16x64xf32>
    %c6 = arith.constant 6 : index
    %c0_151 = arith.constant 0 : index
    %c0_152 = arith.constant 0 : index
    %c0_153 = arith.constant 0 : index
    %161 = vector.load %arg2[%c6, %c0_151, %c0_152, %c0_153] : memref<7x1x16x16xbf16, #tpu.memory_space<vmem>>, vector<1x1x16x16xbf16>
    %162 = vector.shape_cast %161 : vector<1x1x16x16xbf16> to vector<16x16xbf16>
    %163 = arith.truncf %160 : vector<16x64xf32> to vector<16x64xbf16>
    %cst_154 = arith.constant dense<0.000000e+00> : vector<16x64xf32>
    %164 = tpu.matmul %162, %163, %cst_154 {dimension_numbers = #tpu.dot_dimension_numbers<[1], [0], [0], [1], [0, 0, 1, 1], [], []>} : vector<16x16xbf16>, vector<16x64xbf16>, vector<16x64xf32> -> vector<16x64xf32>
    %c6_155 = arith.constant 6 : index
    %c0_156 = arith.constant 0 : index
    %c0_157 = arith.constant 0 : index
    %c0_158 = arith.constant 0 : index
    %165 = vector.load %arg3[%c6_155, %c0_156, %c0_157, %c0_158] : memref<7x1x16x1xf32, #tpu.memory_space<vmem>>, vector<1x1x16x1xf32>
    %166 = vector.shape_cast %165 : vector<1x1x16x1xf32> to vector<16x1xf32>
    %167 = vector.broadcast %166 : vector<16x1xf32> to vector<16x64xf32>
    %168 = arith.addf %164, %167 : vector<16x64xf32>
    %cst_159 = arith.constant 0.000000e+00 : f32
    %169 = vector.broadcast %cst_159 : f32 to vector<16x64xf32>
    %170 = arith.maximumf %168, %169 : vector<16x64xf32>
    %c6_160 = arith.constant 6 : index
    %c0_161 = arith.constant 0 : index
    %c0_162 = arith.constant 0 : index
    %c0_163 = arith.constant 0 : index
    %171 = vector.load %arg4[%c6_160, %c0_161, %c0_162, %c0_163] : memref<7x1x16x16xbf16, #tpu.memory_space<vmem>>, vector<1x1x16x16xbf16>
    %172 = vector.shape_cast %171 : vector<1x1x16x16xbf16> to vector<16x16xbf16>
    %173 = arith.truncf %170 : vector<16x64xf32> to vector<16x64xbf16>
    %cst_164 = arith.constant dense<0.000000e+00> : vector<16x64xf32>
    %174 = tpu.matmul %172, %173, %cst_164 {dimension_numbers = #tpu.dot_dimension_numbers<[1], [0], [0], [1], [0, 0, 1, 1], [], []>} : vector<16x16xbf16>, vector<16x64xbf16>, vector<16x64xf32> -> vector<16x64xf32>
    %175 = arith.addf %160, %174 : vector<16x64xf32>
    %c6_165 = arith.constant 6 : index
    %c0_166 = arith.constant 0 : index
    %c0_167 = arith.constant 0 : index
    %c0_168 = arith.constant 0 : index
    %176 = vector.load %arg5[%c6_165, %c0_166, %c0_167, %c0_168] : memref<7x1x16x1xf32, #tpu.memory_space<vmem>>, vector<1x1x16x1xf32>
    %177 = vector.shape_cast %176 : vector<1x1x16x1xf32> to vector<16x1xf32>
    %178 = vector.broadcast %177 : vector<16x1xf32> to vector<16x64xf32>
    %179 = arith.addf %175, %178 : vector<16x64xf32>
    %cst_169 = arith.constant 0.000000e+00 : f32
    %180 = vector.broadcast %cst_169 : f32 to vector<16x64xf32>
    %181 = arith.maximumf %179, %180 : vector<16x64xf32>
    %c0_170 = arith.constant 0 : index
    %c0_171 = arith.constant 0 : index
    %182 = vector.load %arg8[%c0_170, %c0_171] : memref<64x256xf32, #tpu.memory_space<vmem>>, vector<64x256xf32>
    %cst_172 = arith.constant dense<0.000000e+00> : vector<16x256xf32>
    %183 = tpu.matmul %181, %182, %cst_172 {dimension_numbers = #tpu.dot_dimension_numbers<[1], [0], [0], [1], [0, 0, 1, 1], [], []>} : vector<16x64xf32>, vector<64x256xf32>, vector<16x256xf32> -> vector<16x256xf32>
    %184 = arith.addf %22, %183 : vector<16x256xf32>
    %c0_173 = arith.constant 0 : index
    %c0_174 = arith.constant 0 : index
    %c0_175 = arith.constant 0 : index
    %185 = vector.load %arg10[%c0_173, %c0_174, %c0_175] : memref<1x16x256xf32, #tpu.memory_space<vmem>>, vector<1x16x256xf32>
    %186 = vector.shape_cast %185 : vector<1x16x256xf32> to vector<16x256xf32>
    %187 = vector.shape_cast %184 : vector<16x256xf32> to vector<1x16x256xf32>
    tpu.vector_store %arg10[%c0_173, %c0_174, %c0_175], %187 {strides = array<i32>} : memref<1x16x256xf32, #tpu.memory_space<vmem>>, vector<1x16x256xf32>,
    return
  }
  func.func @transform_0(%arg0: i32) -> (i32, i32, i32) {
    %c0_i32 = arith.constant 0 : i32
    %c0_i32_0 = arith.constant 0 : i32
    %c0_i32_1 = arith.constant 0 : i32
    return %arg0, %c0_i32, %c0_i32_0 : i32, i32, i32
  }
  func.func @transform_1(%arg0: i32) -> (i32, i32, i32, i32) {
    %c0_i32 = arith.constant 0 : i32
    %c0_i32_0 = arith.constant 0 : i32
    %c0_i32_1 = arith.constant 0 : i32
    %c0_i32_2 = arith.constant 0 : i32
    %c0_i32_3 = arith.constant 0 : i32
    return %c0_i32, %c0_i32_0, %c0_i32_1, %c0_i32_2 : i32, i32, i32, i32
  }
  func.func @transform_2(%arg0: i32) -> (i32, i32, i32, i32) {
    %c0_i32 = arith.constant 0 : i32
    %c0_i32_0 = arith.constant 0 : i32
    %c0_i32_1 = arith.constant 0 : i32
    %c0_i32_2 = arith.constant 0 : i32
    %c0_i32_3 = arith.constant 0 : i32
    return %c0_i32, %c0_i32_0, %c0_i32_1, %c0_i32_2 : i32, i32, i32, i32
  }
  func.func @transform_3(%arg0: i32) -> (i32, i32, i32, i32) {
    %c0_i32 = arith.constant 0 : i32
    %c0_i32_0 = arith.constant 0 : i32
    %c0_i32_1 = arith.constant 0 : i32
    %c0_i32_2 = arith.constant 0 : i32
    %c0_i32_3 = arith.constant 0 : i32
    return %c0_i32, %c0_i32_0, %c0_i32_1, %c0_i32_2 : i32, i32, i32, i32
  }
  func.func @transform_4(%arg0: i32) -> (i32, i32, i32, i32) {
    %c0_i32 = arith.constant 0 : i32
    %c0_i32_0 = arith.constant 0 : i32
    %c0_i32_1 = arith.constant 0 : i32
    %c0_i32_2 = arith.constant 0 : i32
    %c0_i32_3 = arith.constant 0 : i32
    return %c0_i32, %c0_i32_0, %c0_i32_1, %c0_i32_2 : i32, i32, i32, i32
  }
  func.func @transform_5(%arg0: i32) -> (i32, i32, i32) {
    %c0_i32 = arith.constant 0 : i32
    %c0_i32_0 = arith.constant 0 : i32
    %c0_i32_1 = arith.constant 0 : i32
    %c0_i32_2 = arith.constant 0 : i32
    return %c0_i32, %c0_i32_0, %c0_i32_1 : i32, i32, i32
  }
  func.func @transform_6(%arg0: i32) -> (i32, i32, i32) {
    %c0_i32 = arith.constant 0 : i32
    %c0_i32_0 = arith.constant 0 : i32
    %c0_i32_1 = arith.constant 0 : i32
    %c0_i32_2 = arith.constant 0 : i32
    return %c0_i32, %c0_i32_0, %c0_i32_1 : i32, i32, i32
  }
  func.func @transform_7(%arg0: i32) -> (i32, i32) {
    %c0_i32 = arith.constant 0 : i32
    %c0_i32_0 = arith.constant 0 : i32
    %c0_i32_1 = arith.constant 0 : i32
    return %c0_i32, %c0_i32_0 : i32, i32
  }
  func.func @transform_8(%arg0: i32) -> (i32, i32) {
    %c0_i32 = arith.constant 0 : i32
    %c0_i32_0 = arith.constant 0 : i32
    %c0_i32_1 = arith.constant 0 : i32
    return %c0_i32, %c0_i32_0 : i32, i32
  }
  func.func @transform_9(%arg0: i32) -> (i32, i32, i32) {
    %c0_i32 = arith.constant 0 : i32
    %c0_i32_0 = arith.constant 0 : i32
    %c0_i32_1 = arith.constant 0 : i32
    return %arg0, %c0_i32, %c0_i32_0 : i32, i32, i32
  }
}

</mosaic_0001>

<llo_original>
// kernel: hourglass_forward.1
$region0: #{hourglass_forward.1}
  #allocation0 [shape = 'u32[]', space=smem, size = 0x4, offset = 0x4, fixed_abs, tag = 'smem constant byte address 0x4 - core index']
  #allocation1 [shape = 'u32[144,128]{1,0:T(1,128)}', space=vmem, size = 0x12000, scoped, tag = 'internal scratch']
  %s0 = inlined_call_operand.vmem [shape: f32[2,16,256], index: 0, kind: input, shape index: {}]
  %s1 = inlined_call_operand.vmem [shape: bf16[7,1,16,16], index: 1, kind: input, shape index: {}]
  %s2 = inlined_call_operand.vmem [shape: f32[7,1,16,1], index: 2, kind: input, shape index: {}]
  %s3 = inlined_call_operand.vmem [shape: bf16[7,1,16,16], index: 3, kind: input, shape index: {}]
  %s4 = inlined_call_operand.vmem [shape: f32[7,1,16,1], index: 4, kind: input, shape index: {}]
  %s5 = inlined_call_operand.hbm [shape: f32[4,256,64], index: 5, kind: input, shape index: {}]
  %s6 = inlined_call_operand.vmem [shape: f32[4,64,16], index: 6, kind: input, shape index: {}]
  %s7 = inlined_call_operand.vmem [shape: f32[64,256], index: 7, kind: input, shape index: {}]
  %s8 = inlined_call_operand.vmem [shape: f32[16,64], index: 8, kind: input, shape index: {}]
  %s9 = inlined_call_operand.vmem [shape: f32[2,16,256], index: 9, kind: output, shape index: {}]
  %s10 = sld [smem:[#allocation0]]
  $region73: #{hourglass_forward.1} parent=0
    _
  %s12 = ssub.s32 1, %s10
  %s13 = scalar_select 0, %s12, %s10
  $region1: #{hourglass_forward.1} parent=0
    #allocation2 [shape = 'u8[524288]{0}', space=vmem, size = 0x80000, scoped, tag = 'input window, operand 5, single buffered']
    #allocation3 [shape = 's32[2]{0}', space=sflag, size = 0x8, scoped, tag = 'scoped memory for hourglass_forward.1']
    %14 = vsyncpa [#allocation3], 0
    loop: start=0, step=1, limit=4
    $region2: #{hourglass_forward.1} parent=1 // loop_pre_header
      _
    $region3: #{hourglass_forward.1} parent=1 // loop_header
      %s16 = sphi 0, %s20
      %p17 = scmp.ge.s32.totalorder %s16, 4
      %s26 = sphi 0, %s28
      %s29 = sphi 0, %s26
      %s30 = sphi 0, %s29
      %s46 = sphi 0, %s30
      %s50 = sphi 0, %s50
      %s52 = sphi 0, %s50
      %s53 = sphi 0, %s52
      %s67 = sphi 0, %s53
      %s71 = sphi 0, %s71
      %s73 = sphi 0, %s71
      %s74 = sphi 0, %s73
      %s88 = sphi 0, %s74
      %s92 = sphi 0, %s92
      %s94 = sphi 0, %s92
      %s95 = sphi 0, %s94
      %s109 = sphi 0, %s95
      %s113 = sphi 0, %s113
      %s115 = sphi 0, %s113
      %s116 = sphi 0, %s115
      %s130 = sphi 0, %s116
      %s134 = sphi 0, %s134
      %s136 = sphi 0, %s134
      %s137 = sphi 0, %s136
      %s151 = sphi 0, %s137
      %s155 = sphi 0, %s155
      %s157 = sphi 0, %s155
      %s158 = sphi 0, %s157
      %s172 = sphi 0, %s158
      %s176 = sphi 0, %s176
      %s178 = sphi 0, %s176
      %s179 = sphi 0, %s178
      %s193 = sphi 0, %s179
      %s197 = sphi 0, %s197
      %s199 = sphi 0, %s197
      %s200 = sphi 0, %s199
      %s214 = sphi 0, %s200
      %s220 = sphi 0, %s222
      %s223 = sphi 0, %s220
      %s224 = sphi 0, %s223
      %s240 = sphi 0, %s224
    $region4: #{hourglass_forward.1} parent=1 // loop_header_branch
      %19 = sbr.rel (%p17) target = $region8
    $region5: #{hourglass_forward.1} parent=1 // loop_body
      %s21 = ssub.s32 %s16, 1
      %s22 = ssub.s32 %s16, 2
      %s23 = sadd.s32 %s16, 1
      %s24 = ssub.s32 %s16, %s23
      %p25 = scmp.eq.s32.totalorder %s24, 0
      %s27 = sadd.s32 %s26, 1
      %s28 = scalar_select %p25, %s26, %s27
      %p31 = pneg %p25
      %p32 = scmp.eq.s32.totalorder %s16, 1
      %p33 = por %p31, %p32
      %p34 = scmp.ne.s32.totalorder %s26, %s29
      %p35 = scmp.eq.s32.totalorder %s16, 0
      %p36 = por %p34, %p35
      %p37 = scmp.ne.s32.totalorder %s26, %s29
      %p38 = scmp.eq.s32.totalorder %s21, 1
      %p39 = por %p37, %p38
      %p40 = scmp.ne.s32.totalorder %s29, %s30
      %p41 = scmp.eq.s32.totalorder %s21, 0
      %p42 = por %p40, %p41
      %p43 = scmp.ne.s32.totalorder %s29, %s30
      %p44 = scmp.eq.s32.totalorder %s22, 1
      %p45 = por %p43, %p44
      %p47 = scmp.ne.s32.totalorder %s30, %s46
      %p48 = scmp.eq.s32.totalorder %s22, 0
      %p49 = por %p47, %p48
      %s51 = sadd.s32 %s50, 1
      %p54 = scmp.eq.s32.totalorder %s16, 1
      %p55 = scmp.ne.s32.totalorder %s50, %s52
      %p56 = scmp.eq.s32.totalorder %s16, 0
      %p57 = por %p55, %p56
      %p58 = scmp.ne.s32.totalorder %s50, %s52
      %p59 = scmp.eq.s32.totalorder %s21, 1
      %p60 = por %p58, %p59
      %p61 = scmp.ne.s32.totalorder %s52, %s53
      %p62 = scmp.eq.s32.totalorder %s21, 0
      %p63 = por %p61, %p62
      %p64 = scmp.ne.s32.totalorder %s52, %s53
      %p65 = scmp.eq.s32.totalorder %s22, 1
      %p66 = por %p64, %p65
      %p68 = scmp.ne.s32.totalorder %s53, %s67
      %p69 = scmp.eq.s32.totalorder %s22, 0
      %p70 = por %p68, %p69
      %s72 = sadd.s32 %s71, 1
      %p75 = scmp.eq.s32.totalorder %s16, 1
      %p76 = scmp.ne.s32.totalorder %s71, %s73
      %p77 = scmp.eq.s32.totalorder %s16, 0
      %p78 = por %p76, %p77
      %p79 = scmp.ne.s32.totalorder %s71, %s73
      %p80 = scmp.eq.s32.totalorder %s21, 1
      %p81 = por %p79, %p80
      %p82 = scmp.ne.s32.totalorder %s73, %s74
      %p83 = scmp.eq.s32.totalorder %s21, 0
      %p84 = por %p82, %p83
      %p85 = scmp.ne.s32.totalorder %s73, %s74
      %p86 = scmp.eq.s32.totalorder %s22, 1
      %p87 = por %p85, %p86
      %p89 = scmp.ne.s32.totalorder %s74, %s88
      %p90 = scmp.eq.s32.totalorder %s22, 0
      %p91 = por %p89, %p90
      %s93 = sadd.s32 %s92, 1
      %p96 = scmp.eq.s32.totalorder %s16, 1
      %p97 = scmp.ne.s32.totalorder %s92, %s94
      %p98 = scmp.eq.s32.totalorder %s16, 0
      %p99 = por %p97, %p98
      %p100 = scmp.ne.s32.totalorder %s92, %s94
      %p101 = scmp.eq.s32.totalorder %s21, 1
      %p102 = por %p100, %p101
      %p103 = scmp.ne.s32.totalorder %s94, %s95
      %p104 = scmp.eq.s32.totalorder %s21, 0
      %p105 = por %p103, %p104
      %p106 = scmp.ne.s32.totalorder %s94, %s95
      %p107 = scmp.eq.s32.totalorder %s22, 1
      %p108 = por %p106, %p107
      %p110 = scmp.ne.s32.totalorder %s95, %s109
      %p111 = scmp.eq.s32.totalorder %s22, 0
      %p112 = por %p110, %p111
      %s114 = sadd.s32 %s113, 1
      %p117 = scmp.eq.s32.totalorder %s16, 1
      %p118 = scmp.ne.s32.totalorder %s113, %s115
      %p119 = scmp.eq.s32.totalorder %s16, 0
      %p120 = por %p118, %p119
      %p121 = scmp.ne.s32.totalorder %s113, %s115
      %p122 = scmp.eq.s32.totalorder %s21, 1
      %p123 = por %p121, %p122
      %p124 = scmp.ne.s32.totalorder %s115, %s116
      %p125 = scmp.eq.s32.totalorder %s21, 0
      %p126 = por %p124, %p125
      %p127 = scmp.ne.s32.totalorder %s115, %s116
      %p128 = scmp.eq.s32.totalorder %s22, 1
      %p129 = por %p127, %p128
      %p131 = scmp.ne.s32.totalorder %s116, %s130
      %p132 = scmp.eq.s32.totalorder %s22, 0
      %p133 = por %p131, %p132
      %s135 = sadd.s32 %s134, 1
      %p138 = scmp.eq.s32.totalorder %s16, 1
      %p139 = scmp.ne.s32.totalorder %s134, %s136
      %p140 = scmp.eq.s32.totalorder %s16, 0
      %p141 = por %p139, %p140
      %p142 = scmp.ne.s32.totalorder %s134, %s136
      %p143 = scmp.eq.s32.totalorder %s21, 1
      %p144 = por %p142, %p143
      %p145 = scmp.ne.s32.totalorder %s136, %s137
      %p146 = scmp.eq.s32.totalorder %s21, 0
      %p147 = por %p145, %p146
      %p148 = scmp.ne.s32.totalorder %s136, %s137
      %p149 = scmp.eq.s32.totalorder %s22, 1
      %p150 = por %p148, %p149
      %p152 = scmp.ne.s32.totalorder %s137, %s151
      %p153 = scmp.eq.s32.totalorder %s22, 0
      %p154 = por %p152, %p153
      %s156 = sadd.s32 %s155, 1
      %p159 = scmp.eq.s32.totalorder %s16, 1
      %p160 = scmp.ne.s32.totalorder %s155, %s157
      %p161 = scmp.eq.s32.totalorder %s16, 0
      %p162 = por %p160, %p161
      %p163 = scmp.ne.s32.totalorder %s155, %s157
      %p164 = scmp.eq.s32.totalorder %s21, 1
      %p165 = por %p163, %p164
      %p166 = scmp.ne.s32.totalorder %s157, %s158
      %p167 = scmp.eq.s32.totalorder %s21, 0
      %p168 = por %p166, %p167
      %p169 = scmp.ne.s32.totalorder %s157, %s158
      %p170 = scmp.eq.s32.totalorder %s22, 1
      %p171 = por %p169, %p170
      %p173 = scmp.ne.s32.totalorder %s158, %s172
      %p174 = scmp.eq.s32.totalorder %s22, 0
      %p175 = por %p173, %p174
      %s177 = sadd.s32 %s176, 1
      %p180 = scmp.eq.s32.totalorder %s16, 1
      %p181 = scmp.ne.s32.totalorder %s176, %s178
      %p182 = scmp.eq.s32.totalorder %s16, 0
      %p183 = por %p181, %p182
      %p184 = scmp.ne.s32.totalorder %s176, %s178
      %p185 = scmp.eq.s32.totalorder %s21, 1
      %p186 = por %p184, %p185
      %p187 = scmp.ne.s32.totalorder %s178, %s179
      %p188 = scmp.eq.s32.totalorder %s21, 0
      %p189 = por %p187, %p188
      %p190 = scmp.ne.s32.totalorder %s178, %s179
      %p191 = scmp.eq.s32.totalorder %s22, 1
      %p192 = por %p190, %p191
      %p194 = scmp.ne.s32.totalorder %s179, %s193
      %p195 = scmp.eq.s32.totalorder %s22, 0
      %p196 = por %p194, %p195
      %s198 = sadd.s32 %s197, 1
      %p201 = scmp.eq.s32.totalorder %s16, 1
      %p202 = scmp.ne.s32.totalorder %s197, %s199
      %p203 = scmp.eq.s32.totalorder %s16, 0
      %p204 = por %p202, %p203
      %p205 = scmp.ne.s32.totalorder %s197, %s199
      %p206 = scmp.eq.s32.totalorder %s21, 1
      %p207 = por %p205, %p206
      %p208 = scmp.ne.s32.totalorder %s199, %s200
      %p209 = scmp.eq.s32.totalorder %s21, 0
      %p210 = por %p208, %p209
      %p211 = scmp.ne.s32.totalorder %s199, %s200
      %p212 = scmp.eq.s32.totalorder %s22, 1
      %p213 = por %p211, %p212
      %p215 = scmp.ne.s32.totalorder %s200, %s214
      %p216 = scmp.eq.s32.totalorder %s22, 0
      %p217 = por %p215, %p216
      %s218 = ssub.s32 %s16, %s23
      %p219 = scmp.eq.s32.totalorder %s218, 0
      %s221 = sadd.s32 %s220, 1
      %s222 = scalar_select %p219, %s220, %s221
      %p225 = pneg %p219
      %p226 = scmp.eq.s32.totalorder %s16, 1
      %p227 = por %p225, %p226
      %p228 = scmp.ne.s32.totalorder %s220, %s223
      %p229 = scmp.eq.s32.totalorder %s16, 0
      %p230 = por %p228, %p229
      %p231 = scmp.ne.s32.totalorder %s220, %s223
      %p232 = scmp.eq.s32.totalorder %s21, 1
      %p233 = por %p231, %p232
      %p234 = scmp.ne.s32.totalorder %s223, %s224
      %p235 = scmp.eq.s32.totalorder %s21, 0
      %p236 = por %p234, %p235
      %p237 = scmp.ne.s32.totalorder %s223, %s224
      %p238 = scmp.eq.s32.totalorder %s22, 1
      %p239 = por %p237, %p238
      %p241 = scmp.ne.s32.totalorder %s224, %s240
      %p242 = scmp.eq.s32.totalorder %s22, 0
      %p243 = por %p241, %p242
      %p244 = scmp.le.s32.totalorder 1, %s16
      %p245 = scmp.lt.s32.totalorder %s16, 3
      %p246 = pnand %p244, %p245
      %p247 = pneg %p246
      // Predicated region
      $region9: #{hourglass_forward.1} parent=5 // pred_check
        _
      $region10: #{hourglass_forward.1} parent=5 // pred_check_branch
        %249 = sbr.rel (%p246) target = $region12
      $region11: #{hourglass_forward.1} parent=5 // pred_region
        %s250 = ssub.s32 %s16, 1
        // Predicated region
        $region13: #{hourglass_forward.1} parent=11 // pred_check
          %p251 = pneg %p63
        $region14: #{hourglass_forward.1} parent=11 // pred_check_branch
          %253 = sbr.rel (%p251) target = $region16
        $region15: #{hourglass_forward.1} parent=11 // pred_region
          _
        $region16: #{hourglass_forward.1} parent=11 // pred_fallthru
          _
        // Predicated region
        $region17: #{hourglass_forward.1} parent=11 // pred_check
          %p254 = pneg %p84
        $region18: #{hourglass_forward.1} parent=11 // pred_check_branch
          %256 = sbr.rel (%p254) target = $region20
        $region19: #{hourglass_forward.1} parent=11 // pred_region
          _
        $region20: #{hourglass_forward.1} parent=11 // pred_fallthru
          _
        // Predicated region
        $region21: #{hourglass_forward.1} parent=11 // pred_check
          %p257 = pneg %p105
        $region22: #{hourglass_forward.1} parent=11 // pred_check_branch
          %259 = sbr.rel (%p257) target = $region24
        $region23: #{hourglass_forward.1} parent=11 // pred_region
          _
        $region24: #{hourglass_forward.1} parent=11 // pred_fallthru
          _
        // Predicated region
        $region25: #{hourglass_forward.1} parent=11 // pred_check
          %p260 = pneg %p126
        $region26: #{hourglass_forward.1} parent=11 // pred_check_branch
          %262 = sbr.rel (%p260) target = $region28
        $region27: #{hourglass_forward.1} parent=11 // pred_region
          _
        $region28: #{hourglass_forward.1} parent=11 // pred_fallthru
          _
        // Predicated region
        $region29: #{hourglass_forward.1} parent=11 // pred_check
          %p263 = pneg %p147
        $region30: #{hourglass_forward.1} parent=11 // pred_check_branch
          %265 = sbr.rel (%p263) target = $region32
        $region31: #{hourglass_forward.1} parent=11 // pred_region
          %s267 = ssub.s32 16384, 16384
          %268 = vsyncadd [#allocation3], %s267
          %s269 = sshll.u32 [#allocation2], 4
          %s270 = int_to_ptr.vmem [resolvable:$true] %s269
          %275 = dma.hbm_to_vmem [thread:$0]  %s5, 16384, %s270, [#allocation3], 128, 128, 8
        $region32: #{hourglass_forward.1} parent=11 // pred_fallthru
          _
        // Predicated region
        $region33: #{hourglass_forward.1} parent=11 // pred_check
          %p276 = pneg %p168
        $region34: #{hourglass_forward.1} parent=11 // pred_check_branch
          %278 = sbr.rel (%p276) target = $region36
        $region35: #{hourglass_forward.1} parent=11 // pred_region
          _
        $region36: #{hourglass_forward.1} parent=11 // pred_fallthru
          _
        // Predicated region
        $region37: #{hourglass_forward.1} parent=11 // pred_check
          %p279 = pneg %p189
        $region38: #{hourglass_forward.1} parent=11 // pred_check_branch
          %281 = sbr.rel (%p279) target = $region40
        $region39: #{hourglass_forward.1} parent=11 // pred_region
          _
        $region40: #{hourglass_forward.1} parent=11 // pred_fallthru
          _
        // Predicated region
        $region41: #{hourglass_forward.1} parent=11 // pred_check
          %p282 = pneg %p210
        $region42: #{hourglass_forward.1} parent=11 // pred_check_branch
          %284 = sbr.rel (%p282) target = $region44
        $region43: #{hourglass_forward.1} parent=11 // pred_region
          _
        $region44: #{hourglass_forward.1} parent=11 // pred_fallthru
          _
      $region12: #{hourglass_forward.1} parent=5 // pred_fallthru
        _
      %p285 = scmp.lt.s32.totalorder %s16, 2
      // Predicated region
      $region45: #{hourglass_forward.1} parent=5 // pred_check
        %p286 = pneg %p285
      $region46: #{hourglass_forward.1} parent=5 // pred_check_branch
        %288 = sbr.rel (%p286) target = $region48
      $region47: #{hourglass_forward.1} parent=5 // pred_region
        // Predicated region
        $region49: #{hourglass_forward.1} parent=47 // pred_check
          %p289 = pneg %p36
        $region50: #{hourglass_forward.1} parent=47 // pred_check_branch
          %291 = sbr.rel (%p289) target = $region52
        $region51: #{hourglass_forward.1} parent=47 // pred_region
          %p292 = scmp.lt.s32.totalorder %s16, 1
          %s293 = scalar_select %p292, %s16, 1
          %s294 = smul.addr %s293, 4
          %s295 = smul.addr %s294, 8
          %s296 = scalar_lea.vmem %s0, %s295
        $region52: #{hourglass_forward.1} parent=47 // pred_fallthru
          _
      $region48: #{hourglass_forward.1} parent=5 // pred_fallthru
        _
      %p297 = scmp.le.s32.totalorder 1, %s16
      %p298 = scmp.lt.s32.totalorder %s16, 3
      %p299 = pnand %p297, %p298
      %p300 = pneg %p299
      // Predicated region
      $region53: #{hourglass_forward.1} parent=5 // pred_check
        _
      $region54: #{hourglass_forward.1} parent=5 // pred_check_branch
        %302 = sbr.rel (%p299) target = $region56
      $region55: #{hourglass_forward.1} parent=5 // pred_region
        %s303 = ssub.s32 %s16, 1
        // Predicated region
        $region57: #{hourglass_forward.1} parent=55 // pred_check
          %p304 = pneg %p147
        $region58: #{hourglass_forward.1} parent=55 // pred_check_branch
          %306 = sbr.rel (%p304) target = $region60
        $region59: #{hourglass_forward.1} parent=55 // pred_region
          %307 = dma.done [#allocation3], 16384
        $region60: #{hourglass_forward.1} parent=55 // pred_fallthru
          _
        %p308 = scmp.lt.s32.totalorder %s21, 1
        %s309 = scalar_select %p308, %s21, 1
        %s310 = smul.addr %s309, 4
        %s311 = smul.addr %s310, 8
        %s312 = scalar_lea.vmem %s0, %s311
        %p313 = pneg %p42
        %p314 = pneg %p39
        %p315 = pneg %p63
        %p316 = pneg %p60
        %p317 = pneg %p84
        %p318 = pneg %p81
        %p319 = pneg %p105
        %p320 = pneg %p102
        %p321 = pneg %p126
        %p322 = pneg %p123
        %p323 = pneg %p147
        %p324 = pneg %p144
        %p325 = pneg %p168
        %p326 = pneg %p165
        %p327 = pneg %p189
        %p328 = pneg %p186
        %p329 = pneg %p210
        %p330 = pneg %p207
        %p331 = pneg %p236
        %p332 = pneg %p233
        %p333 = scmp.lt.s32.totalorder %s21, 1
        %s334 = scalar_select %p333, %s21, 1
        %s335 = smul.addr %s334, 4
        %s336 = smul.addr %s335, 8
        %s337 = scalar_lea.vmem %s9, %s336
        %p338 = scmp.lt.s32.totalorder %s21, 1
        %s339 = scalar_select %p338, %s21, 1
        %s340 = smul.addr %s339, 4
        %s341 = smul.addr %s340, 8
        %s342 = scalar_lea.vmem %s0, %s341
        %p343 = scmp.lt.s32.totalorder %s21, 1
        %s344 = scalar_select %p343, %s21, 1
        %s345 = smul.addr %s344, 4
        %s346 = smul.addr %s345, 8
        %s347 = scalar_lea.vmem %s9, %s346
        %v349 = vld [vmem:[%s342] sm:$0xff]
        %v350 = vld [vmem:[%s342 + $0x8] sm:$0xff]
        %v351 = vld [vmem:[%s342 + $0x10] sm:$0xff]
        %v352 = vld [vmem:[%s342 + $0x18] sm:$0xff]
        %s353 = scalar_lea.vmem %s1, 32
        %v354 = vld [vmem:[%s353] sm:$0xf]
        %v355 = vld [vmem:[%s353 + $0x4] sm:$0xf]
        %v356 = vpack.c.bf16 %v351, %v349
        %v357 = vpack.c.bf16 %v352, %v350
        %s358 = scalar_lea.vmem %s2, 64
        %v359 = vld [vmem:[%s358] sm:$0xff]
        %v360 = vld [vmem:[%s358 + $0x8] sm:$0xff]
        %362 = vset.pattern.permute.xlu0 0
        %363 = vperm.xlu0 %362, %v359
        %v364 = vpop.permute.xlu0 %363
        %367 = vset.pattern.permute.xlu0 0
        %368 = vperm.xlu0 %367, %v360
        %v369 = vpop.permute.xlu0 %368
        %v373 = vunpack.c.l.b16 %v354
        %v374 = vunpack.c.l.b16 %v355
        %v375 = vpack.c.b16 %v374, %v373
        %vm376 = vcmask 130048
        %v378 = vsel %vm376, %v375, 0
        %380 = vmatprep.subr.bf16.mxu0 %v357
        %381 = vmatpush1.bf16.msra.mxu0 %v356
        %382 = vmatprep.subr.bf16.mxu0 0
        %383 = vmatpush1.bf16.msra.mxu0 0
        %384 = vmatprep.subr.bf16.mxu0 0
        %385 = vmatpush1.bf16.msra.mxu0 0
        %386 = vmatprep.subr.bf16.mxu0 0
        %387 = vmatpush1.bf16.msra.mxu0 0
        %388 = vmatprep.subr.bf16.mxu0 0
        %389 = vmatpush1.bf16.msra.mxu0 0
        %390 = vmatprep.subr.bf16.mxu0 0
        %391 = vmatpush1.bf16.msra.mxu0 0
        %392 = vmatprep.subr.bf16.mxu0 0
        %393 = vmatpush1.bf16.msra.mxu0 0
        %394 = vmatprep.subr.bf16.mxu0 0
        %395 = vmatpush1.bf16.msra.mxu0 0
        %396 = vmatprep.subr.bf16.mxu0 0
        %397 = vmatpush1.bf16.msra.mxu0 0
        %398 = vmatprep.subr.bf16.mxu0 0
        %399 = vmatpush1.bf16.msra.mxu0 0
        %400 = vmatprep.subr.bf16.mxu0 0
        %401 = vmatpush1.bf16.msra.mxu0 0
        %402 = vmatprep.subr.bf16.mxu0 0
        %403 = vmatpush1.bf16.msra.mxu0 0
        %404 = vmatprep.subr.bf16.mxu0 0
        %405 = vmatpush1.bf16.msra.mxu0 0
        %406 = vmatprep.subr.bf16.mxu0 0
        %407 = vmatpush1.bf16.msra.mxu0 0
        %408 = vmatprep.subr.bf16.mxu0 0
        %409 = vmatpush1.bf16.msra.mxu0 0
        %410 = vmatprep.subr.bf16.mxu0 0
        %411 = vmatpush1.bf16.msra.mxu0 0
        %412 = vmatprep.mubr.bf16.mxu0 0
        %413 = vmatmul.mubr.bf16.gmra.mrb[0].mxu0 %v378
        %v414 = vpop.f32.mrb[0].mxu0
        %v415 = vadd.f32 %v364, %v414
        %v416 = vpop.f32.mrb[0].mxu0
        %v417 = vadd.f32 %v364, %v416
        %v418 = vpop.f32.mrb[0].mxu0
        %v419 = vadd.f32 %v369, %v418
        %v420 = vpop.f32.mrb[0].mxu0
        %v421 = vadd.f32 %v369, %v420
        %422 = vdwg.mxu0
        %v423 = vmax.f32 %v415, 0.0
        %v424 = vmax.f32 %v417, 0.0
        %v425 = vmax.f32 %v419, 0.0
        %v426 = vmax.f32 %v421, 0.0
        %s427 = scalar_lea.vmem %s3, 32
        %v428 = vld [vmem:[%s427] sm:$0xf]
        %v429 = vld [vmem:[%s427 + $0x4] sm:$0xf]
        %v430 = vpack.c.bf16 %v425, %v423
        %v431 = vpack.c.bf16 %v426, %v424
        %v434 = vunpack.c.l.b16 %v428
        %v435 = vunpack.c.l.b16 %v429
        %v436 = vpack.c.b16 %v435, %v434
        %v438 = vsel %vm376, %v436, 0
        %440 = vmatprep.subr.bf16.mxu0 %v431
        %441 = vmatpush1.bf16.msra.mxu0 %v430
        %442 = vmatprep.subr.bf16.mxu0 0
        %443 = vmatpush1.bf16.msra.mxu0 0
        %444 = vmatprep.subr.bf16.mxu0 0
        %445 = vmatpush1.bf16.msra.mxu0 0
        %446 = vmatprep.subr.bf16.mxu0 0
        %447 = vmatpush1.bf16.msra.mxu0 0
        %448 = vmatprep.subr.bf16.mxu0 0
        %449 = vmatpush1.bf16.msra.mxu0 0
        %450 = vmatprep.subr.bf16.mxu0 0
        %451 = vmatpush1.bf16.msra.mxu0 0
        %452 = vmatprep.subr.bf16.mxu0 0
        %453 = vmatpush1.bf16.msra.mxu0 0
        %454 = vmatprep.subr.bf16.mxu0 0
        %455 = vmatpush1.bf16.msra.mxu0 0
        %456 = vmatprep.subr.bf16.mxu0 0
        %457 = vmatpush1.bf16.msra.mxu0 0
        %458 = vmatprep.subr.bf16.mxu0 0
        %459 = vmatpush1.bf16.msra.mxu0 0
        %460 = vmatprep.subr.bf16.mxu0 0
        %461 = vmatpush1.bf16.msra.mxu0 0
        %462 = vmatprep.subr.bf16.mxu0 0
        %463 = vmatpush1.bf16.msra.mxu0 0
        %464 = vmatprep.subr.bf16.mxu0 0
        %465 = vmatpush1.bf16.msra.mxu0 0
        %466 = vmatprep.subr.bf16.mxu0 0
        %467 = vmatpush1.bf16.msra.mxu0 0
        %468 = vmatprep.subr.bf16.mxu0 0
        %469 = vmatpush1.bf16.msra.mxu0 0
        %470 = vmatprep.subr.bf16.mxu0 0
        %471 = vmatpush1.bf16.msra.mxu0 0
        %472 = vmatprep.mubr.bf16.mxu0 0
        %473 = vmatmul.mubr.bf16.gmra.mrb[0].mxu0 %v438
        %v474 = vpop.f32.mrb[0].mxu0
        %v475 = vadd.f32 0.0, %v474
        %v476 = vpop.f32.mrb[0].mxu0
        %v477 = vadd.f32 0.0, %v476
        %v478 = vpop.f32.mrb[0].mxu0
        %v479 = vadd.f32 0.0, %v478
        %v480 = vpop.f32.mrb[0].mxu0
        %v481 = vadd.f32 0.0, %v480
        %482 = vdwg.mxu0
        %v483 = vadd.f32 %v349, %v475
        %v484 = vadd.f32 %v350, %v477
        %v485 = vadd.f32 %v351, %v479
        %v486 = vadd.f32 %v352, %v481
        %s487 = scalar_lea.vmem %s4, 64
        %v488 = vld [vmem:[%s487] sm:$0xff]
        %v489 = vld [vmem:[%s487 + $0x8] sm:$0xff]
        %491 = vset.pattern.permute.xlu0 0
        %492 = vperm.xlu0 %491, %v488
        %v493 = vpop.permute.xlu0 %492
        %496 = vset.pattern.permute.xlu0 0
        %497 = vperm.xlu0 %496, %v489
        %v498 = vpop.permute.xlu0 %497
        %v500 = vadd.f32 %v483, %v493
        %v501 = vadd.f32 %v484, %v493
        %v502 = vadd.f32 %v485, %v498
        %v503 = vadd.f32 %v486, %v498
        %v504 = vmax.f32 %v500, 0.0
        %v505 = vmax.f32 %v501, 0.0
        %v506 = vmax.f32 %v502, 0.0
        %v507 = vmax.f32 %v503, 0.0
        %v508 = vld [vmem:[#allocation2] sm:$0xff]
        %v509 = vld [vmem:[#allocation2 + $0x8] sm:$0xff]
        %v510 = vld [vmem:[#allocation2 + $0x10] sm:$0xff]
        %v511 = vld [vmem:[#allocation2 + $0x18] sm:$0xff]
        %v512 = vld [vmem:[#allocation2 + $0x20] sm:$0xff]
        %v513 = vld [vmem:[#allocation2 + $0x28] sm:$0xff]
        %v514 = vld [vmem:[#allocation2 + $0x30] sm:$0xff]
        %v515 = vld [vmem:[#allocation2 + $0x38] sm:$0xff]
        %v516 = vld [vmem:[#allocation2 + $0x40] sm:$0xff]
        %v517 = vld [vmem:[#allocation2 + $0x48] sm:$0xff]
        %v518 = vld [vmem:[#allocation2 + $0x50] sm:$0xff]
        %v519 = vld [vmem:[#allocation2 + $0x58] sm:$0xff]
        %v520 = vld [vmem:[#allocation2 + $0x60] sm:$0xff]
        %v521 = vld [vmem:[#allocation2 + $0x68] sm:$0xff]
        %v522 = vld [vmem:[#allocation2 + $0x70] sm:$0xff]
        %v523 = vld [vmem:[#allocation2 + $0x78] sm:$0xff]
        %v524 = vld [vmem:[#allocation2 + $0x80] sm:$0xff]
        %v525 = vld [vmem:[#allocation2 + $0x88] sm:$0xff]
        %v526 = vld [vmem:[#allocation2 + $0x90] sm:$0xff]
        %v527 = vld [vmem:[#allocation2 + $0x98] sm:$0xff]
        %v528 = vld [vmem:[#allocation2 + $0xa0] sm:$0xff]
        %v529 = vld [vmem:[#allocation2 + $0xa8] sm:$0xff]
        %v530 = vld [vmem:[#allocation2 + $0xb0] sm:$0xff]
        %v531 = vld [vmem:[#allocation2 + $0xb8] sm:$0xff]
        %v532 = vld [vmem:[#allocation2 + $0xc0] sm:$0xff]
        %v533 = vld [vmem:[#allocation2 + $0xc8] sm:$0xff]
        %v534 = vld [vmem:[#allocation2 + $0xd0] sm:$0xff]
        %v535 = vld [vmem:[#allocation2 + $0xd8] sm:$0xff]
        %v536 = vld [vmem:[#allocation2 + $0xe0] sm:$0xff]
        %v537 = vld [vmem:[#allocation2 + $0xe8] sm:$0xff]
        %v538 = vld [vmem:[#allocation2 + $0xf0] sm:$0xff]
        %v539 = vld [vmem:[#allocation2 + $0xf8] sm:$0xff]
        %540 = vmatprep.subr.mxu0 0.0
        %541 = vmatpush1.msra.mxu0 %v508
        %542 = vmatprep.subr.mxu0 0.0
        %543 = vmatpush1.msra.mxu0 %v509
        %544 = vmatprep.subr.mxu0 0.0
        %545 = vmatpush1.msra.mxu0 %v510
        %546 = vmatprep.subr.mxu0 0.0
        %547 = vmatpush1.msra.mxu0 %v511
        %548 = vmatprep.subr.mxu0 0.0
        %549 = vmatpush1.msra.mxu0 %v512
        %550 = vmatprep.subr.mxu0 0.0
        %551 = vmatpush1.msra.mxu0 %v513
        %552 = vmatprep.subr.mxu0 0.0
        %553 = vmatpush1.msra.mxu0 %v514
        %554 = vmatprep.subr.mxu0 0.0
        %555 = vmatpush1.msra.mxu0 %v515
        %556 = vmatprep.subr.mxu0 0.0
        %557 = vmatpush1.msra.mxu0 %v516
        %558 = vmatprep.subr.mxu0 0.0
        %559 = vmatpush1.msra.mxu0 %v517
        %560 = vmatprep.subr.mxu0 0.0
        %561 = vmatpush1.msra.mxu0 %v518
        %562 = vmatprep.subr.mxu0 0.0
        %563 = vmatpush1.msra.mxu0 %v519
        %564 = vmatprep.subr.mxu0 0.0
        %565 = vmatpush1.msra.mxu0 %v520
        %566 = vmatprep.subr.mxu0 0.0
        %567 = vmatpush1.msra.mxu0 %v521
        %568 = vmatprep.subr.mxu0 0.0
        %569 = vmatpush1.msra.mxu0 %v522
        %570 = vmatprep.subr.mxu0 0.0
        %571 = vmatpush1.msra.mxu0 %v523
        %572 = vmatprep.subr.mxu0 0.0
        %573 = vmatpush1.msra.mxu0 %v524
        %574 = vmatprep.subr.mxu0 0.0
        %575 = vmatpush1.msra.mxu0 %v525
        %576 = vmatprep.subr.mxu0 0.0
        %577 = vmatpush1.msra.mxu0 %v526
        %578 = vmatprep.subr.mxu0 0.0
        %579 = vmatpush1.msra.mxu0 %v527
        %580 = vmatprep.subr.mxu0 0.0
        %581 = vmatpush1.msra.mxu0 %v528
        %582 = vmatprep.subr.mxu0 0.0
        %583 = vmatpush1.msra.mxu0 %v529
        %584 = vmatprep.subr.mxu0 0.0
        %585 = vmatpush1.msra.mxu0 %v530
        %586 = vmatprep.subr.mxu0 0.0
        %587 = vmatpush1.msra.mxu0 %v531
        %588 = vmatprep.subr.mxu0 0.0
        %589 = vmatpush1.msra.mxu0 %v532
        %590 = vmatprep.subr.mxu0 0.0
        %591 = vmatpush1.msra.mxu0 %v533
        %592 = vmatprep.subr.mxu0 0.0
        %593 = vmatpush1.msra.mxu0 %v534
        %594 = vmatprep.subr.mxu0 0.0
        %595 = vmatpush1.msra.mxu0 %v535
        %596 = vmatprep.subr.mxu0 0.0
        %597 = vmatpush1.msra.mxu0 %v536
        %598 = vmatprep.subr.mxu0 0.0
        %599 = vmatpush1.msra.mxu0 %v537
        %600 = vmatprep.subr.mxu0 0.0
        %601 = vmatpush1.msra.mxu0 %v538
        %602 = vmatprep.subr.mxu0 0.0
        %603 = vmatpush1.msra.mxu0 %v539
        %604 = vmatprep.mubr.f32.mxu0 %v350
        %605 = vmatmul.mubr.f32.gmra.mrb[0].mxu0 %v349
        %v606 = vpop.f32.mrb[0].mxu0
        %v607 = vadd.f32 0.0, %v606
        %v608 = vpop.f32.mrb[0].mxu0
        %609 = vmatprep.mubr.f32.mxu0 %v352
        %610 = vmatmul.mubr.f32.gmra.mrb[0].mxu0 %v351
        %v611 = vpop.f32.mrb[0].mxu0
        %v612 = vadd.f32 0.0, %v611
        %v613 = vpop.f32.mrb[0].mxu0
        %614 = vdwg.mxu0
        %s615 = scalar_lea.vmem [#allocation2], 256
        %v616 = vld [vmem:[%s615] sm:$0xff]
        %v617 = vld [vmem:[%s615 + $0x8] sm:$0xff]
        %v618 = vld [vmem:[%s615 + $0x10] sm:$0xff]
        %v619 = vld [vmem:[%s615 + $0x18] sm:$0xff]
        %v620 = vld [vmem:[%s615 + $0x20] sm:$0xff]
        %v621 = vld [vmem:[%s615 + $0x28] sm:$0xff]
        %v622 = vld [vmem:[%s615 + $0x30] sm:$0xff]
        %v623 = vld [vmem:[%s615 + $0x38] sm:$0xff]
        %v624 = vld [vmem:[%s615 + $0x40] sm:$0xff]
        %v625 = vld [vmem:[%s615 + $0x48] sm:$0xff]
        %v626 = vld [vmem:[%s615 + $0x50] sm:$0xff]
        %v627 = vld [vmem:[%s615 + $0x58] sm:$0xff]
        %v628 = vld [vmem:[%s615 + $0x60] sm:$0xff]
        %v629 = vld [vmem:[%s615 + $0x68] sm:$0xff]
        %v630 = vld [vmem:[%s615 + $0x70] sm:$0xff]
        %v631 = vld [vmem:[%s615 + $0x78] sm:$0xff]
        %v632 = vld [vmem:[%s615 + $0x80] sm:$0xff]
        %v633 = vld [vmem:[%s615 + $0x88] sm:$0xff]
        %v634 = vld [vmem:[%s615 + $0x90] sm:$0xff]
        %v635 = vld [vmem:[%s615 + $0x98] sm:$0xff]
        %v636 = vld [vmem:[%s615 + $0xa0] sm:$0xff]
        %v637 = vld [vmem:[%s615 + $0xa8] sm:$0xff]
        %v638 = vld [vmem:[%s615 + $0xb0] sm:$0xff]
        %v639 = vld [vmem:[%s615 + $0xb8] sm:$0xff]
        %v640 = vld [vmem:[%s615 + $0xc0] sm:$0xff]
        %v641 = vld [vmem:[%s615 + $0xc8] sm:$0xff]
        %v642 = vld [vmem:[%s615 + $0xd0] sm:$0xff]
        %v643 = vld [vmem:[%s615 + $0xd8] sm:$0xff]
        %v644 = vld [vmem:[%s615 + $0xe0] sm:$0xff]
        %v645 = vld [vmem:[%s615 + $0xe8] sm:$0xff]
        %v646 = vld [vmem:[%s615 + $0xf0] sm:$0xff]
        %v647 = vld [vmem:[%s615 + $0xf8] sm:$0xff]
        %648 = vmatprep.subr.mxu0 0.0
        %649 = vmatpush1.msra.mxu0 %v616
        %650 = vmatprep.subr.mxu0 0.0
        %651 = vmatpush1.msra.mxu0 %v617
        %652 = vmatprep.subr.mxu0 0.0
        %653 = vmatpush1.msra.mxu0 %v618
        %654 = vmatprep.subr.mxu0 0.0
        %655 = vmatpush1.msra.mxu0 %v619
        %656 = vmatprep.subr.mxu0 0.0
        %657 = vmatpush1.msra.mxu0 %v620
        %658 = vmatprep.subr.mxu0 0.0
        %659 = vmatpush1.msra.mxu0 %v621
        %660 = vmatprep.subr.mxu0 0.0
        %661 = vmatpush1.msra.mxu0 %v622
        %662 = vmatprep.subr.mxu0 0.0
        %663 = vmatpush1.msra.mxu0 %v623
        %664 = vmatprep.subr.mxu0 0.0
        %665 = vmatpush1.msra.mxu0 %v624
        %666 = vmatprep.subr.mxu0 0.0
        %667 = vmatpush1.msra.mxu0 %v625
        %668 = vmatprep.subr.mxu0 0.0
        %669 = vmatpush1.msra.mxu0 %v626
        %670 = vmatprep.subr.mxu0 0.0
        %671 = vmatpush1.msra.mxu0 %v627
        %672 = vmatprep.subr.mxu0 0.0
        %673 = vmatpush1.msra.mxu0 %v628
        %674 = vmatprep.subr.mxu0 0.0
        %675 = vmatpush1.msra.mxu0 %v629
        %676 = vmatprep.subr.mxu0 0.0
        %677 = vmatpush1.msra.mxu0 %v630
        %678 = vmatprep.subr.mxu0 0.0
        %679 = vmatpush1.msra.mxu0 %v631
        %680 = vmatprep.subr.mxu0 0.0
        %681 = vmatpush1.msra.mxu0 %v632
        %682 = vmatprep.subr.mxu0 0.0
        %683 = vmatpush1.msra.mxu0 %v633
        %684 = vmatprep.subr.mxu0 0.0
        %685 = vmatpush1.msra.mxu0 %v634
        %686 = vmatprep.subr.mxu0 0.0
        %687 = vmatpush1.msra.mxu0 %v635
        %688 = vmatprep.subr.mxu0 0.0
        %689 = vmatpush1.msra.mxu0 %v636
        %690 = vmatprep.subr.mxu0 0.0
        %691 = vmatpush1.msra.mxu0 %v637
        %692 = vmatprep.subr.mxu0 0.0
        %693 = vmatpush1.msra.mxu0 %v638
        %694 = vmatprep.subr.mxu0 0.0
        %695 = vmatpush1.msra.mxu0 %v639
        %696 = vmatprep.subr.mxu0 0.0
        %697 = vmatpush1.msra.mxu0 %v640
        %698 = vmatprep.subr.mxu0 0.0
        %699 = vmatpush1.msra.mxu0 %v641
        %700 = vmatprep.subr.mxu0 0.0
        %701 = vmatpush1.msra.mxu0 %v642
        %702 = vmatprep.subr.mxu0 0.0
        %703 = vmatpush1.msra.mxu0 %v643
        %704 = vmatprep.subr.mxu0 0.0
        %705 = vmatpush1.msra.mxu0 %v644
        %706 = vmatprep.subr.mxu0 0.0
        %707 = vmatpush1.msra.mxu0 %v645
        %708 = vmatprep.subr.mxu0 0.0
        %709 = vmatpush1.msra.mxu0 %v646
        %710 = vmatprep.subr.mxu0 0.0
        %711 = vmatpush1.msra.mxu0 %v647
        %712 = vmatprep.mubr.f32.mxu0 %v350
        %713 = vmatmul.mubr.f32.gmra.mrb[0].mxu0 %v349
        %v714 = vpop.f32.mrb[0].mxu0
        %v715 = vadd.f32 0.0, %v714
        %v716 = vpop.f32.mrb[0].mxu0
        %717 = vmatprep.mubr.f32.mxu0 %v352
        %718 = vmatmul.mubr.f32.gmra.mrb[0].mxu0 %v351
        %v719 = vpop.f32.mrb[0].mxu0
        %v720 = vadd.f32 0.0, %v719
        %v721 = vpop.f32.mrb[0].mxu0
        %722 = vdwg.mxu0
        %v723 = vmax.f32 %v607, %v715
        %v724 = vmax.f32 %v612, %v720
        %s725 = scalar_lea.vmem [#allocation2], 512
        %v726 = vld [vmem:[%s725] sm:$0xff]
        %v727 = vld [vmem:[%s725 + $0x8] sm:$0xff]
        %v728 = vld [vmem:[%s725 + $0x10] sm:$0xff]
        %v729 = vld [vmem:[%s725 + $0x18] sm:$0xff]
        %v730 = vld [vmem:[%s725 + $0x20] sm:$0xff]
        %v731 = vld [vmem:[%s725 + $0x28] sm:$0xff]
        %v732 = vld [vmem:[%s725 + $0x30] sm:$0xff]
        %v733 = vld [vmem:[%s725 + $0x38] sm:$0xff]
        %v734 = vld [vmem:[%s725 + $0x40] sm:$0xff]
        %v735 = vld [vmem:[%s725 + $0x48] sm:$0xff]
        %v736 = vld [vmem:[%s725 + $0x50] sm:$0xff]
        %v737 = vld [vmem:[%s725 + $0x58] sm:$0xff]
        %v738 = vld [vmem:[%s725 + $0x60] sm:$0xff]
        %v739 = vld [vmem:[%s725 + $0x68] sm:$0xff]
        %v740 = vld [vmem:[%s725 + $0x70] sm:$0xff]
        %v741 = vld [vmem:[%s725 + $0x78] sm:$0xff]
        %v742 = vld [vmem:[%s725 + $0x80] sm:$0xff]
        %v743 = vld [vmem:[%s725 + $0x88] sm:$0xff]
        %v744 = vld [vmem:[%s725 + $0x90] sm:$0xff]
        %v745 = vld [vmem:[%s725 + $0x98] sm:$0xff]
        %v746 = vld [vmem:[%s725 + $0xa0] sm:$0xff]
        %v747 = vld [vmem:[%s725 + $0xa8] sm:$0xff]
        %v748 = vld [vmem:[%s725 + $0xb0] sm:$0xff]
        %v749 = vld [vmem:[%s725 + $0xb8] sm:$0xff]
        %v750 = vld [vmem:[%s725 + $0xc0] sm:$0xff]
        %v751 = vld [vmem:[%s725 + $0xc8] sm:$0xff]
        %v752 = vld [vmem:[%s725 + $0xd0] sm:$0xff]
        %v753 = vld [vmem:[%s725 + $0xd8] sm:$0xff]
        %v754 = vld [vmem:[%s725 + $0xe0] sm:$0xff]
        %v755 = vld [vmem:[%s725 + $0xe8] sm:$0xff]
        %v756 = vld [vmem:[%s725 + $0xf0] sm:$0xff]
        %v757 = vld [vmem:[%s725 + $0xf8] sm:$0xff]
        %758 = vmatprep.subr.mxu0 0.0
        %759 = vmatpush1.msra.mxu0 %v726
        %760 = vmatprep.subr.mxu0 0.0
        %761 = vmatpush1.msra.mxu0 %v727
        %762 = vmatprep.subr.mxu0 0.0
        %763 = vmatpush1.msra.mxu0 %v728
        %764 = vmatprep.subr.mxu0 0.0
        %765 = vmatpush1.msra.mxu0 %v729
        %766 = vmatprep.subr.mxu0 0.0
        %767 = vmatpush1.msra.mxu0 %v730
        %768 = vmatprep.subr.mxu0 0.0
        %769 = vmatpush1.msra.mxu0 %v731
        %770 = vmatprep.subr.mxu0 0.0
        %771 = vmatpush1.msra.mxu0 %v732
        %772 = vmatprep.subr.mxu0 0.0
        %773 = vmatpush1.msra.mxu0 %v733
        %774 = vmatprep.subr.mxu0 0.0
        %775 = vmatpush1.msra.mxu0 %v734
        %776 = vmatprep.subr.mxu0 0.0
        %777 = vmatpush1.msra.mxu0 %v735
        %778 = vmatprep.subr.mxu0 0.0
        %779 = vmatpush1.msra.mxu0 %v736
        %780 = vmatprep.subr.mxu0 0.0
        %781 = vmatpush1.msra.mxu0 %v737
        %782 = vmatprep.subr.mxu0 0.0
        %783 = vmatpush1.msra.mxu0 %v738
        %784 = vmatprep.subr.mxu0 0.0
        %785 = vmatpush1.msra.mxu0 %v739
        %786 = vmatprep.subr.mxu0 0.0
        %787 = vmatpush1.msra.mxu0 %v740
        %788 = vmatprep.subr.mxu0 0.0
        %789 = vmatpush1.msra.mxu0 %v741
        %790 = vmatprep.subr.mxu0 0.0
        %791 = vmatpush1.msra.mxu0 %v742
        %792 = vmatprep.subr.mxu0 0.0
        %793 = vmatpush1.msra.mxu0 %v743
        %794 = vmatprep.subr.mxu0 0.0
        %795 = vmatpush1.msra.mxu0 %v744
        %796 = vmatprep.subr.mxu0 0.0
        %797 = vmatpush1.msra.mxu0 %v745
        %798 = vmatprep.subr.mxu0 0.0
        %799 = vmatpush1.msra.mxu0 %v746
        %800 = vmatprep.subr.mxu0 0.0
        %801 = vmatpush1.msra.mxu0 %v747
        %802 = vmatprep.subr.mxu0 0.0
        %803 = vmatpush1.msra.mxu0 %v748
        %804 = vmatprep.subr.mxu0 0.0
        %805 = vmatpush1.msra.mxu0 %v749
        %806 = vmatprep.subr.mxu0 0.0
        %807 = vmatpush1.msra.mxu0 %v750
        %808 = vmatprep.subr.mxu0 0.0
        %809 = vmatpush1.msra.mxu0 %v751
        %810 = vmatprep.subr.mxu0 0.0
        %811 = vmatpush1.msra.mxu0 %v752
        %812 = vmatprep.subr.mxu0 0.0
        %813 = vmatpush1.msra.mxu0 %v753
        %814 = vmatprep.subr.mxu0 0.0
        %815 = vmatpush1.msra.mxu0 %v754
        %816 = vmatprep.subr.mxu0 0.0
        %817 = vmatpush1.msra.mxu0 %v755
        %818 = vmatprep.subr.mxu0 0.0
        %819 = vmatpush1.msra.mxu0 %v756
        %820 = vmatprep.subr.mxu0 0.0
        %821 = vmatpush1.msra.mxu0 %v757
        %822 = vmatprep.mubr.f32.mxu0 %v350
        %823 = vmatmul.mubr.f32.gmra.mrb[0].mxu0 %v349
        %v824 = vpop.f32.mrb[0].mxu0
        %v825 = vadd.f32 0.0, %v824
        %v826 = vpop.f32.mrb[0].mxu0
        %827 = vmatprep.mubr.f32.mxu0 %v352
        %828 = vmatmul.mubr.f32.gmra.mrb[0].mxu0 %v351
        %v829 = vpop.f32.mrb[0].mxu0
        %v830 = vadd.f32 0.0, %v829
        %v831 = vpop.f32.mrb[0].mxu0
        %832 = vdwg.mxu0
        %v833 = vmax.f32 %v723, %v825
        %v834 = vmax.f32 %v724, %v830
        %s835 = scalar_lea.vmem [#allocation2], 768
        %v836 = vld [vmem:[%s835] sm:$0xff]
        %v837 = vld [vmem:[%s835 + $0x8] sm:$0xff]
        %v838 = vld [vmem:[%s835 + $0x10] sm:$0xff]
        %v839 = vld [vmem:[%s835 + $0x18] sm:$0xff]
        %v840 = vld [vmem:[%s835 + $0x20] sm:$0xff]
        %v841 = vld [vmem:[%s835 + $0x28] sm:$0xff]
        %v842 = vld [vmem:[%s835 + $0x30] sm:$0xff]
        %v843 = vld [vmem:[%s835 + $0x38] sm:$0xff]
        %v844 = vld [vmem:[%s835 + $0x40] sm:$0xff]
        %v845 = vld [vmem:[%s835 + $0x48] sm:$0xff]
        %v846 = vld [vmem:[%s835 + $0x50] sm:$0xff]
        %v847 = vld [vmem:[%s835 + $0x58] sm:$0xff]
        %v848 = vld [vmem:[%s835 + $0x60] sm:$0xff]
        %v849 = vld [vmem:[%s835 + $0x68] sm:$0xff]
        %v850 = vld [vmem:[%s835 + $0x70] sm:$0xff]
        %v851 = vld [vmem:[%s835 + $0x78] sm:$0xff]
        %v852 = vld [vmem:[%s835 + $0x80] sm:$0xff]
        %v853 = vld [vmem:[%s835 + $0x88] sm:$0xff]
        %v854 = vld [vmem:[%s835 + $0x90] sm:$0xff]
        %v855 = vld [vmem:[%s835 + $0x98] sm:$0xff]
        %v856 = vld [vmem:[%s835 + $0xa0] sm:$0xff]
        %v857 = vld [vmem:[%s835 + $0xa8] sm:$0xff]
        %v858 = vld [vmem:[%s835 + $0xb0] sm:$0xff]
        %v859 = vld [vmem:[%s835 + $0xb8] sm:$0xff]
        %v860 = vld [vmem:[%s835 + $0xc0] sm:$0xff]
        %v861 = vld [vmem:[%s835 + $0xc8] sm:$0xff]
        %v862 = vld [vmem:[%s835 + $0xd0] sm:$0xff]
        %v863 = vld [vmem:[%s835 + $0xd8] sm:$0xff]
        %v864 = vld [vmem:[%s835 + $0xe0] sm:$0xff]
        %v865 = vld [vmem:[%s835 + $0xe8] sm:$0xff]
        %v866 = vld [vmem:[%s835 + $0xf0] sm:$0xff]
        %v867 = vld [vmem:[%s835 + $0xf8] sm:$0xff]
        %868 = vmatprep.subr.mxu0 0.0
        %869 = vmatpush1.msra.mxu0 %v836
        %870 = vmatprep.subr.mxu0 0.0
        %871 = vmatpush1.msra.mxu0 %v837
        %872 = vmatprep.subr.mxu0 0.0
        %873 = vmatpush1.msra.mxu0 %v838
        %874 = vmatprep.subr.mxu0 0.0
        %875 = vmatpush1.msra.mxu0 %v839
        %876 = vmatprep.subr.mxu0 0.0
        %877 = vmatpush1.msra.mxu0 %v840
        %878 = vmatprep.subr.mxu0 0.0
        %879 = vmatpush1.msra.mxu0 %v841
        %880 = vmatprep.subr.mxu0 0.0
        %881 = vmatpush1.msra.mxu0 %v842
        %882 = vmatprep.subr.mxu0 0.0
        %883 = vmatpush1.msra.mxu0 %v843
        %884 = vmatprep.subr.mxu0 0.0
        %885 = vmatpush1.msra.mxu0 %v844
        %886 = vmatprep.subr.mxu0 0.0
        %887 = vmatpush1.msra.mxu0 %v845
        %888 = vmatprep.subr.mxu0 0.0
        %889 = vmatpush1.msra.mxu0 %v846
        %890 = vmatprep.subr.mxu0 0.0
        %891 = vmatpush1.msra.mxu0 %v847
        %892 = vmatprep.subr.mxu0 0.0
        %893 = vmatpush1.msra.mxu0 %v848
        %894 = vmatprep.subr.mxu0 0.0
        %895 = vmatpush1.msra.mxu0 %v849
        %896 = vmatprep.subr.mxu0 0.0
        %897 = vmatpush1.msra.mxu0 %v850
        %898 = vmatprep.subr.mxu0 0.0
        %899 = vmatpush1.msra.mxu0 %v851
        %900 = vmatprep.subr.mxu0 0.0
        %901 = vmatpush1.msra.mxu0 %v852
        %902 = vmatprep.subr.mxu0 0.0
        %903 = vmatpush1.msra.mxu0 %v853
        %904 = vmatprep.subr.mxu0 0.0
        %905 = vmatpush1.msra.mxu0 %v854
        %906 = vmatprep.subr.mxu0 0.0
        %907 = vmatpush1.msra.mxu0 %v855
        %908 = vmatprep.subr.mxu0 0.0
        %909 = vmatpush1.msra.mxu0 %v856
        %910 = vmatprep.subr.mxu0 0.0
        %911 = vmatpush1.msra.mxu0 %v857
        %912 = vmatprep.subr.mxu0 0.0
        %913 = vmatpush1.msra.mxu0 %v858
        %914 = vmatprep.subr.mxu0 0.0
        %915 = vmatpush1.msra.mxu0 %v859
        %916 = vmatprep.subr.mxu0 0.0
        %917 = vmatpush1.msra.mxu0 %v860
        %918 = vmatprep.subr.mxu0 0.0
        %919 = vmatpush1.msra.mxu0 %v861
        %920 = vmatprep.subr.mxu0 0.0
        %921 = vmatpush1.msra.mxu0 %v862
        %922 = vmatprep.subr.mxu0 0.0
        %923 = vmatpush1.msra.mxu0 %v863
        %924 = vmatprep.subr.mxu0 0.0
        %925 = vmatpush1.msra.mxu0 %v864
        %926 = vmatprep.subr.mxu0 0.0
        %927 = vmatpush1.msra.mxu0 %v865
        %928 = vmatprep.subr.mxu0 0.0
        %929 = vmatpush1.msra.mxu0 %v866
        %930 = vmatprep.subr.mxu0 0.0
        %931 = vmatpush1.msra.mxu0 %v867
        %932 = vmatprep.mubr.f32.mxu0 %v350
        %933 = vmatmul.mubr.f32.gmra.mrb[0].mxu0 %v349
        %v934 = vpop.f32.mrb[0].mxu0
        %v935 = vadd.f32 0.0, %v934
        %v936 = vpop.f32.mrb[0].mxu0
        %937 = vmatprep.mubr.f32.mxu0 %v352
        %938 = vmatmul.mubr.f32.gmra.mrb[0].mxu0 %v351
        %v939 = vpop.f32.mrb[0].mxu0
        %v940 = vadd.f32 0.0, %v939
        %v941 = vpop.f32.mrb[0].mxu0
        %942 = vdwg.mxu0
        %v943 = vmax.f32 %v833, %v935
        %v944 = vmax.f32 %v834, %v940
        %s945 = scalar_lea.vmem %s1, 40
        %v946 = vld [vmem:[%s945] sm:$0xf]
        %v947 = vld [vmem:[%s945 + $0x4] sm:$0xf]
        %v948 = vpack.c.bf16 %v944, %v943
        %s949 = scalar_lea.vmem %s2, 80
        %v950 = vld [vmem:[%s949] sm:$0xff]
        %v951 = vld [vmem:[%s949 + $0x8] sm:$0xff]
        %953 = vset.pattern.permute.xlu0 0
        %954 = vperm.xlu0 %953, %v950
        %v955 = vpop.permute.xlu0 %954
        %958 = vset.pattern.permute.xlu0 0
        %959 = vperm.xlu0 %958, %v951
        %v960 = vpop.permute.xlu0 %959
        %v964 = vunpack.c.l.b16 %v946
        %v965 = vunpack.c.l.b16 %v947
        %v966 = vpack.c.b16 %v965, %v964
        %v968 = vsel %vm376, %v966, 0
        %970 = vmatprep.subr.bf16.mxu0 0
        %971 = vmatpush1.bf16.msra.mxu0 %v948
        %972 = vmatprep.subr.bf16.mxu0 0
        %973 = vmatpush1.bf16.msra.mxu0 0
        %974 = vmatprep.subr.bf16.mxu0 0
        %975 = vmatpush1.bf16.msra.mxu0 0
        %976 = vmatprep.subr.bf16.mxu0 0
        %977 = vmatpush1.bf16.msra.mxu0 0
        %978 = vmatprep.subr.bf16.mxu0 0
        %979 = vmatpush1.bf16.msra.mxu0 0
        %980 = vmatprep.subr.bf16.mxu0 0
        %981 = vmatpush1.bf16.msra.mxu0 0
        %982 = vmatprep.subr.bf16.mxu0 0
        %983 = vmatpush1.bf16.msra.mxu0 0
        %984 = vmatprep.subr.bf16.mxu0 0
        %985 = vmatpush1.bf16.msra.mxu0 0
        %986 = vmatprep.subr.bf16.mxu0 0
        %987 = vmatpush1.bf16.msra.mxu0 0
        %988 = vmatprep.subr.bf16.mxu0 0
        %989 = vmatpush1.bf16.msra.mxu0 0
        %990 = vmatprep.subr.bf16.mxu0 0
        %991 = vmatpush1.bf16.msra.mxu0 0
        %992 = vmatprep.subr.bf16.mxu0 0
        %993 = vmatpush1.bf16.msra.mxu0 0
        %994 = vmatprep.subr.bf16.mxu0 0
        %995 = vmatpush1.bf16.msra.mxu0 0
        %996 = vmatprep.subr.bf16.mxu0 0
        %997 = vmatpush1.bf16.msra.mxu0 0
        %998 = vmatprep.subr.bf16.mxu0 0
        %999 = vmatpush1.bf16.msra.mxu0 0
        %1000 = vmatprep.subr.bf16.mxu0 0
        %1001 = vmatpush1.bf16.msra.mxu0 0
        %1002 = vmatprep.mubr.bf16.mxu0 0
        %1003 = vmatmul.mubr.bf16.gmra.mrb[0].mxu0 %v968
        %v1004 = vpop.f32.mrb[0].mxu0
        %v1005 = vadd.f32 %v955, %v1004
        %v1006 = vpop.f32.mrb[0].mxu0
        %v1007 = vpop.f32.mrb[0].mxu0
        %v1008 = vadd.f32 %v960, %v1007
        %v1009 = vpop.f32.mrb[0].mxu0
        %1010 = vdwg.mxu0
        %v1011 = vmax.f32 %v1005, 0.0
        %v1012 = vmax.f32 %v1008, 0.0
        %s1013 = scalar_lea.vmem %s3, 40
        %v1014 = vld [vmem:[%s1013] sm:$0xf]
        %v1015 = vld [vmem:[%s1013 + $0x4] sm:$0xf]
        %v1016 = vpack.c.bf16 %v1012, %v1011
        %v1019 = vunpack.c.l.b16 %v1014
        %v1020 = vunpack.c.l.b16 %v1015
        %v1021 = vpack.c.b16 %v1020, %v1019
        %v1023 = vsel %vm376, %v1021, 0
        %1025 = vmatprep.subr.bf16.mxu0 0
        %1026 = vmatpush1.bf16.msra.mxu0 %v1016
        %1027 = vmatprep.subr.bf16.mxu0 0
        %1028 = vmatpush1.bf16.msra.mxu0 0
        %1029 = vmatprep.subr.bf16.mxu0 0
        %1030 = vmatpush1.bf16.msra.mxu0 0
        %1031 = vmatprep.subr.bf16.mxu0 0
        %1032 = vmatpush1.bf16.msra.mxu0 0
        %1033 = vmatprep.subr.bf16.mxu0 0
        %1034 = vmatpush1.bf16.msra.mxu0 0
        %1035 = vmatprep.subr.bf16.mxu0 0
        %1036 = vmatpush1.bf16.msra.mxu0 0
        %1037 = vmatprep.subr.bf16.mxu0 0
        %1038 = vmatpush1.bf16.msra.mxu0 0
        %1039 = vmatprep.subr.bf16.mxu0 0
        %1040 = vmatpush1.bf16.msra.mxu0 0
        %1041 = vmatprep.subr.bf16.mxu0 0
        %1042 = vmatpush1.bf16.msra.mxu0 0
        %1043 = vmatprep.subr.bf16.mxu0 0
        %1044 = vmatpush1.bf16.msra.mxu0 0
        %1045 = vmatprep.subr.bf16.mxu0 0
        %1046 = vmatpush1.bf16.msra.mxu0 0
        %1047 = vmatprep.subr.bf16.mxu0 0
        %1048 = vmatpush1.bf16.msra.mxu0 0
        %1049 = vmatprep.subr.bf16.mxu0 0
        %1050 = vmatpush1.bf16.msra.mxu0 0
        %1051 = vmatprep.subr.bf16.mxu0 0
        %1052 = vmatpush1.bf16.msra.mxu0 0
        %1053 = vmatprep.subr.bf16.mxu0 0
        %1054 = vmatpush1.bf16.msra.mxu0 0
        %1055 = vmatprep.subr.bf16.mxu0 0
        %1056 = vmatpush1.bf16.msra.mxu0 0
        %1057 = vmatprep.mubr.bf16.mxu0 0
        %1058 = vmatmul.mubr.bf16.gmra.mrb[0].mxu0 %v1023
        %v1059 = vpop.f32.mrb[0].mxu0
        %v1060 = vadd.f32 0.0, %v1059
        %v1061 = vpop.f32.mrb[0].mxu0
        %v1062 = vpop.f32.mrb[0].mxu0
        %v1063 = vadd.f32 0.0, %v1062
        %v1064 = vpop.f32.mrb[0].mxu0
        %1065 = vdwg.mxu0
        %v1066 = vadd.f32 %v943, %v1060
        %v1067 = vadd.f32 %v944, %v1063
        %s1068 = scalar_lea.vmem %s4, 80
        %v1069 = vld [vmem:[%s1068] sm:$0xff]
        %v1070 = vld [vmem:[%s1068 + $0x8] sm:$0xff]
        %1072 = vset.pattern.permute.xlu0 0
        %1073 = vperm.xlu0 %1072, %v1069
        %v1074 = vpop.permute.xlu0 %1073
        %1077 = vset.pattern.permute.xlu0 0
        %1078 = vperm.xlu0 %1077, %v1070
        %v1079 = vpop.permute.xlu0 %1078
        %v1081 = vadd.f32 %v1066, %v1074
        %v1082 = vadd.f32 %v1067, %v1079
        %v1083 = vmax.f32 %v1081, 0.0
        %v1084 = vmax.f32 %v1082, 0.0
        %v1085 = vld [vmem:[%s1] sm:$0xf]
        %v1086 = vld [vmem:[%s1 + $0x4] sm:$0xf]
        %v1087 = vpack.c.bf16 %v1084, %v1083
        %v1088 = vld [vmem:[%s2] sm:$0xff]
        %v1089 = vld [vmem:[%s2 + $0x8] sm:$0xff]
        %1091 = vset.pattern.permute.xlu0 0
        %1092 = vperm.xlu0 %1091, %v1088
        %v1093 = vpop.permute.xlu0 %1092
        %1096 = vset.pattern.permute.xlu0 0
        %1097 = vperm.xlu0 %1096, %v1089
        %v1098 = vpop.permute.xlu0 %1097
        %v1102 = vunpack.c.l.b16 %v1085
        %v1103 = vunpack.c.l.b16 %v1086
        %v1104 = vpack.c.b16 %v1103, %v1102
        %v1106 = vsel %vm376, %v1104, 0
        %1108 = vmatprep.subr.bf16.mxu0 0
        %1109 = vmatpush1.bf16.msra.mxu0 %v1087
        %1110 = vmatprep.subr.bf16.mxu0 0
        %1111 = vmatpush1.bf16.msra.mxu0 0
        %1112 = vmatprep.subr.bf16.mxu0 0
        %1113 = vmatpush1.bf16.msra.mxu0 0
        %1114 = vmatprep.subr.bf16.mxu0 0
        %1115 = vmatpush1.bf16.msra.mxu0 0
        %1116 = vmatprep.subr.bf16.mxu0 0
        %1117 = vmatpush1.bf16.msra.mxu0 0
        %1118 = vmatprep.subr.bf16.mxu0 0
        %1119 = vmatpush1.bf16.msra.mxu0 0
        %1120 = vmatprep.subr.bf16.mxu0 0
        %1121 = vmatpush1.bf16.msra.mxu0 0
        %1122 = vmatprep.subr.bf16.mxu0 0
        %1123 = vmatpush1.bf16.msra.mxu0 0
        %1124 = vmatprep.subr.bf16.mxu0 0
        %1125 = vmatpush1.bf16.msra.mxu0 0
        %1126 = vmatprep.subr.bf16.mxu0 0
        %1127 = vmatpush1.bf16.msra.mxu0 0
        %1128 = vmatprep.subr.bf16.mxu0 0
        %1129 = vmatpush1.bf16.msra.mxu0 0
        %1130 = vmatprep.subr.bf16.mxu0 0
        %1131 = vmatpush1.bf16.msra.mxu0 0
        %1132 = vmatprep.subr.bf16.mxu0 0
        %1133 = vmatpush1.bf16.msra.mxu0 0
        %1134 = vmatprep.subr.bf16.mxu0 0
        %1135 = vmatpush1.bf16.msra.mxu0 0
        %1136 = vmatprep.subr.bf16.mxu0 0
        %1137 = vmatpush1.bf16.msra.mxu0 0
        %1138 = vmatprep.subr.bf16.mxu0 0
        %1139 = vmatpush1.bf16.msra.mxu0 0
        %1140 = vmatprep.mubr.bf16.mxu0 0
        %1141 = vmatmul.mubr.bf16.gmra.mrb[0].mxu0 %v1106
        %v1142 = vpop.f32.mrb[0].mxu0
        %v1143 = vadd.f32 %v1093, %v1142
        %v1144 = vpop.f32.mrb[0].mxu0
        %v1145 = vpop.f32.mrb[0].mxu0
        %v1146 = vadd.f32 %v1098, %v1145
        %v1147 = vpop.f32.mrb[0].mxu0
        %1148 = vdwg.mxu0
        %v1149 = vmax.f32 %v1143, 0.0
        %v1150 = vmax.f32 %v1146, 0.0
        %v1151 = vld [vmem:[%s3] sm:$0xf]
        %v1152 = vld [vmem:[%s3 + $0x4] sm:$0xf]
        %v1153 = vpack.c.bf16 %v1150, %v1149
        %v1156 = vunpack.c.l.b16 %v1151
        %v1157 = vunpack.c.l.b16 %v1152
        %v1158 = vpack.c.b16 %v1157, %v1156
        %v1160 = vsel %vm376, %v1158, 0
        %1162 = vmatprep.subr.bf16.mxu0 0
        %1163 = vmatpush1.bf16.msra.mxu0 %v1153
        %1164 = vmatprep.subr.bf16.mxu0 0
        %1165 = vmatpush1.bf16.msra.mxu0 0
        %1166 = vmatprep.subr.bf16.mxu0 0
        %1167 = vmatpush1.bf16.msra.mxu0 0
        %1168 = vmatprep.subr.bf16.mxu0 0
        %1169 = vmatpush1.bf16.msra.mxu0 0
        %1170 = vmatprep.subr.bf16.mxu0 0
        %1171 = vmatpush1.bf16.msra.mxu0 0
        %1172 = vmatprep.subr.bf16.mxu0 0
        %1173 = vmatpush1.bf16.msra.mxu0 0
        %1174 = vmatprep.subr.bf16.mxu0 0
        %1175 = vmatpush1.bf16.msra.mxu0 0
        %1176 = vmatprep.subr.bf16.mxu0 0
        %1177 = vmatpush1.bf16.msra.mxu0 0
        %1178 = vmatprep.subr.bf16.mxu0 0
        %1179 = vmatpush1.bf16.msra.mxu0 0
        %1180 = vmatprep.subr.bf16.mxu0 0
        %1181 = vmatpush1.bf16.msra.mxu0 0
        %1182 = vmatprep.subr.bf16.mxu0 0
        %1183 = vmatpush1.bf16.msra.mxu0 0
        %1184 = vmatprep.subr.bf16.mxu0 0
        %1185 = vmatpush1.bf16.msra.mxu0 0
        %1186 = vmatprep.subr.bf16.mxu0 0
        %1187 = vmatpush1.bf16.msra.mxu0 0
        %1188 = vmatprep.subr.bf16.mxu0 0
        %1189 = vmatpush1.bf16.msra.mxu0 0
        %1190 = vmatprep.subr.bf16.mxu0 0
        %1191 = vmatpush1.bf16.msra.mxu0 0
        %1192 = vmatprep.subr.bf16.mxu0 0
        %1193 = vmatpush1.bf16.msra.mxu0 0
        %1194 = vmatprep.mubr.bf16.mxu0 0
        %1195 = vmatmul.mubr.bf16.gmra.mrb[0].mxu0 %v1160
        %v1196 = vpop.f32.mrb[0].mxu0
        %v1197 = vadd.f32 0.0, %v1196
        %v1198 = vpop.f32.mrb[0].mxu0
        %v1199 = vpop.f32.mrb[0].mxu0
        %v1200 = vadd.f32 0.0, %v1199
        %v1201 = vpop.f32.mrb[0].mxu0
        %1202 = vdwg.mxu0
        %v1203 = vadd.f32 %v1083, %v1197
        %v1204 = vadd.f32 %v1084, %v1200
        %v1205 = vld [vmem:[%s4] sm:$0xff]
        %v1206 = vld [vmem:[%s4 + $0x8] sm:$0xff]
        %1208 = vset.pattern.permute.xlu0 0
        %1209 = vperm.xlu0 %1208, %v1205
        %v1210 = vpop.permute.xlu0 %1209
        %1213 = vset.pattern.permute.xlu0 0
        %1214 = vperm.xlu0 %1213, %v1206
        %v1215 = vpop.permute.xlu0 %1214
        %v1217 = vadd.f32 %v1203, %v1210
        %v1218 = vadd.f32 %v1204, %v1215
        %v1219 = vmax.f32 %v1217, 0.0
        %v1220 = vmax.f32 %v1218, 0.0
        %v1221 = vld [vmem:[%s6] sm:$0xff]
        %v1222 = vld [vmem:[%s6 + $0x8] sm:$0xff]
        %v1223 = vld [vmem:[%s6 + $0x10] sm:$0xff]
        %v1224 = vld [vmem:[%s6 + $0x18] sm:$0xff]
        %v1225 = vld [vmem:[%s6 + $0x20] sm:$0xff]
        %v1226 = vld [vmem:[%s6 + $0x28] sm:$0xff]
        %v1227 = vld [vmem:[%s6 + $0x30] sm:$0xff]
        %v1228 = vld [vmem:[%s6 + $0x38] sm:$0xff]
        %vm1229 = vcmask 523264
        %v1231 = vsel %vm1229, %v1083, 0
        %v1234 = vsel %vm1229, %v1084, 0
        %1236 = vmatprep.subr.mxu0 0.0
        %1237 = vmatpush1.msra.mxu0 %v1221
        %1238 = vmatprep.subr.mxu0 0.0
        %1239 = vmatpush1.msra.mxu0 %v1222
        %1240 = vmatprep.subr.mxu0 0.0
        %1241 = vmatpush1.msra.mxu0 %v1223
        %1242 = vmatprep.subr.mxu0 0.0
        %1243 = vmatpush1.msra.mxu0 %v1224
        %1244 = vmatprep.subr.mxu0 0.0
        %1245 = vmatpush1.msra.mxu0 %v1225
        %1246 = vmatprep.subr.mxu0 0.0
        %1247 = vmatpush1.msra.mxu0 %v1226
        %1248 = vmatprep.subr.mxu0 0.0
        %1249 = vmatpush1.msra.mxu0 %v1227
        %1250 = vmatprep.subr.mxu0 0.0
        %1251 = vmatpush1.msra.mxu0 %v1228
        %1252 = vmatprep.subr.mxu0 0.0
        %1253 = vmatpush1.msra.mxu0 0.0
        %1254 = vmatprep.subr.mxu0 0.0
        %1255 = vmatpush1.msra.mxu0 0.0
        %1256 = vmatprep.subr.mxu0 0.0
        %1257 = vmatpush1.msra.mxu0 0.0
        %1258 = vmatprep.subr.mxu0 0.0
        %1259 = vmatpush1.msra.mxu0 0.0
        %1260 = vmatprep.subr.mxu0 0.0
        %1261 = vmatpush1.msra.mxu0 0.0
        %1262 = vmatprep.subr.mxu0 0.0
        %1263 = vmatpush1.msra.mxu0 0.0
        %1264 = vmatprep.subr.mxu0 0.0
        %1265 = vmatpush1.msra.mxu0 0.0
        %1266 = vmatprep.subr.mxu0 0.0
        %1267 = vmatpush1.msra.mxu0 0.0
        %1268 = vmatprep.subr.mxu0 0.0
        %1269 = vmatpush1.msra.mxu0 0.0
        %1270 = vmatprep.subr.mxu0 0.0
        %1271 = vmatpush1.msra.mxu0 0.0
        %1272 = vmatprep.subr.mxu0 0.0
        %1273 = vmatpush1.msra.mxu0 0.0
        %1274 = vmatprep.subr.mxu0 0.0
        %1275 = vmatpush1.msra.mxu0 0.0
        %1276 = vmatprep.subr.mxu0 0.0
        %1277 = vmatpush1.msra.mxu0 0.0
        %1278 = vmatprep.subr.mxu0 0.0
        %1279 = vmatpush1.msra.mxu0 0.0
        %1280 = vmatprep.subr.mxu0 0.0
        %1281 = vmatpush1.msra.mxu0 0.0
        %1282 = vmatprep.subr.mxu0 0.0
        %1283 = vmatpush1.msra.mxu0 0.0
        %1284 = vmatprep.subr.mxu0 0.0
        %1285 = vmatpush1.msra.mxu0 0.0
        %1286 = vmatprep.subr.mxu0 0.0
        %1287 = vmatpush1.msra.mxu0 0.0
        %1288 = vmatprep.subr.mxu0 0.0
        %1289 = vmatpush1.msra.mxu0 0.0
        %1290 = vmatprep.subr.mxu0 0.0
        %1291 = vmatpush1.msra.mxu0 0.0
        %1292 = vmatprep.subr.mxu0 0.0
        %1293 = vmatpush1.msra.mxu0 0.0
        %1294 = vmatprep.subr.mxu0 0.0
        %1295 = vmatpush1.msra.mxu0 0.0
        %1296 = vmatprep.subr.mxu0 0.0
        %1297 = vmatpush1.msra.mxu0 0.0
        %1298 = vmatprep.subr.mxu0 0.0
        %1299 = vmatpush1.msra.mxu0 0.0
        %1300 = vmatprep.mubr.f32.mxu0 0.0
        %1301 = vmatmul.mubr.f32.gmra.mrb[0].mxu0 %v1231
        %v1302 = vpop.f32.mrb[0].mxu0
        %v1303 = vadd.f32 0.0, %v1302
        %v1304 = vpop.f32.mrb[0].mxu0
        %1305 = vmatprep.mubr.f32.mxu0 0.0
        %1306 = vmatmul.mubr.f32.gmra.mrb[0].mxu0 %v1234
        %v1307 = vpop.f32.mrb[0].mxu0
        %v1308 = vadd.f32 0.0, %v1307
        %v1309 = vpop.f32.mrb[0].mxu0
        %1310 = vdwg.mxu0
        %s1311 = scalar_lea.vmem %s6, 64
        %v1312 = vld [vmem:[%s1311] sm:$0xff]
        %v1313 = vld [vmem:[%s1311 + $0x8] sm:$0xff]
        %v1314 = vld [vmem:[%s1311 + $0x10] sm:$0xff]
        %v1315 = vld [vmem:[%s1311 + $0x18] sm:$0xff]
        %v1316 = vld [vmem:[%s1311 + $0x20] sm:$0xff]
        %v1317 = vld [vmem:[%s1311 + $0x28] sm:$0xff]
        %v1318 = vld [vmem:[%s1311 + $0x30] sm:$0xff]
        %v1319 = vld [vmem:[%s1311 + $0x38] sm:$0xff]
        %1320 = vmatprep.subr.mxu0 0.0
        %1321 = vmatpush1.msra.mxu0 %v1312
        %1322 = vmatprep.subr.mxu0 0.0
        %1323 = vmatpush1.msra.mxu0 %v1313
        %1324 = vmatprep.subr.mxu0 0.0
        %1325 = vmatpush1.msra.mxu0 %v1314
        %1326 = vmatprep.subr.mxu0 0.0
        %1327 = vmatpush1.msra.mxu0 %v1315
        %1328 = vmatprep.subr.mxu0 0.0
        %1329 = vmatpush1.msra.mxu0 %v1316
        %1330 = vmatprep.subr.mxu0 0.0
        %1331 = vmatpush1.msra.mxu0 %v1317
        %1332 = vmatprep.subr.mxu0 0.0
        %1333 = vmatpush1.msra.mxu0 %v1318
        %1334 = vmatprep.subr.mxu0 0.0
        %1335 = vmatpush1.msra.mxu0 %v1319
        %1336 = vmatprep.subr.mxu0 0.0
        %1337 = vmatpush1.msra.mxu0 0.0
        %1338 = vmatprep.subr.mxu0 0.0
        %1339 = vmatpush1.msra.mxu0 0.0
        %1340 = vmatprep.subr.mxu0 0.0
        %1341 = vmatpush1.msra.mxu0 0.0
        %1342 = vmatprep.subr.mxu0 0.0
        %1343 = vmatpush1.msra.mxu0 0.0
        %1344 = vmatprep.subr.mxu0 0.0
        %1345 = vmatpush1.msra.mxu0 0.0
        %1346 = vmatprep.subr.mxu0 0.0
        %1347 = vmatpush1.msra.mxu0 0.0
        %1348 = vmatprep.subr.mxu0 0.0
        %1349 = vmatpush1.msra.mxu0 0.0
        %1350 = vmatprep.subr.mxu0 0.0
        %1351 = vmatpush1.msra.mxu0 0.0
        %1352 = vmatprep.subr.mxu0 0.0
        %1353 = vmatpush1.msra.mxu0 0.0
        %1354 = vmatprep.subr.mxu0 0.0
        %1355 = vmatpush1.msra.mxu0 0.0
        %1356 = vmatprep.subr.mxu0 0.0
        %1357 = vmatpush1.msra.mxu0 0.0
        %1358 = vmatprep.subr.mxu0 0.0
        %1359 = vmatpush1.msra.mxu0 0.0
        %1360 = vmatprep.subr.mxu0 0.0
        %1361 = vmatpush1.msra.mxu0 0.0
        %1362 = vmatprep.subr.mxu0 0.0
        %1363 = vmatpush1.msra.mxu0 0.0
        %1364 = vmatprep.subr.mxu0 0.0
        %1365 = vmatpush1.msra.mxu0 0.0
        %1366 = vmatprep.subr.mxu0 0.0
        %1367 = vmatpush1.msra.mxu0 0.0
        %1368 = vmatprep.subr.mxu0 0.0
        %1369 = vmatpush1.msra.mxu0 0.0
        %1370 = vmatprep.subr.mxu0 0.0
        %1371 = vmatpush1.msra.mxu0 0.0
        %1372 = vmatprep.subr.mxu0 0.0
        %1373 = vmatpush1.msra.mxu0 0.0
        %1374 = vmatprep.subr.mxu0 0.0
        %1375 = vmatpush1.msra.mxu0 0.0
        %1376 = vmatprep.subr.mxu0 0.0
        %1377 = vmatpush1.msra.mxu0 0.0
        %1378 = vmatprep.subr.mxu0 0.0
        %1379 = vmatpush1.msra.mxu0 0.0
        %1380 = vmatprep.subr.mxu0 0.0
        %1381 = vmatpush1.msra.mxu0 0.0
        %1382 = vmatprep.subr.mxu0 0.0
        %1383 = vmatpush1.msra.mxu0 0.0
        %1384 = vmatprep.mubr.f32.mxu0 0.0
        %1385 = vmatmul.mubr.f32.gmra.mrb[0].mxu0 %v1231
        %v1386 = vpop.f32.mrb[0].mxu0
        %v1387 = vadd.f32 0.0, %v1386
        %v1388 = vpop.f32.mrb[0].mxu0
        %1389 = vmatprep.mubr.f32.mxu0 0.0
        %1390 = vmatmul.mubr.f32.gmra.mrb[0].mxu0 %v1234
        %v1391 = vpop.f32.mrb[0].mxu0
        %v1392 = vadd.f32 0.0, %v1391
        %v1393 = vpop.f32.mrb[0].mxu0
        %1394 = vdwg.mxu0
        %v1395 = vmax.f32 %v1303, %v1387
        %v1396 = vmax.f32 %v1308, %v1392
        %s1397 = scalar_lea.vmem %s6, 128
        %v1398 = vld [vmem:[%s1397] sm:$0xff]
        %v1399 = vld [vmem:[%s1397 + $0x8] sm:$0xff]
        %v1400 = vld [vmem:[%s1397 + $0x10] sm:$0xff]
        %v1401 = vld [vmem:[%s1397 + $0x18] sm:$0xff]
        %v1402 = vld [vmem:[%s1397 + $0x20] sm:$0xff]
        %v1403 = vld [vmem:[%s1397 + $0x28] sm:$0xff]
        %v1404 = vld [vmem:[%s1397 + $0x30] sm:$0xff]
        %v1405 = vld [vmem:[%s1397 + $0x38] sm:$0xff]
        %1406 = vmatprep.subr.mxu0 0.0
        %1407 = vmatpush1.msra.mxu0 %v1398
        %1408 = vmatprep.subr.mxu0 0.0
        %1409 = vmatpush1.msra.mxu0 %v1399
        %1410 = vmatprep.subr.mxu0 0.0
        %1411 = vmatpush1.msra.mxu0 %v1400
        %1412 = vmatprep.subr.mxu0 0.0
        %1413 = vmatpush1.msra.mxu0 %v1401
        %1414 = vmatprep.subr.mxu0 0.0
        %1415 = vmatpush1.msra.mxu0 %v1402
        %1416 = vmatprep.subr.mxu0 0.0
        %1417 = vmatpush1.msra.mxu0 %v1403
        %1418 = vmatprep.subr.mxu0 0.0
        %1419 = vmatpush1.msra.mxu0 %v1404
        %1420 = vmatprep.subr.mxu0 0.0
        %1421 = vmatpush1.msra.mxu0 %v1405
        %1422 = vmatprep.subr.mxu0 0.0
        %1423 = vmatpush1.msra.mxu0 0.0
        %1424 = vmatprep.subr.mxu0 0.0
        %1425 = vmatpush1.msra.mxu0 0.0
        %1426 = vmatprep.subr.mxu0 0.0
        %1427 = vmatpush1.msra.mxu0 0.0
        %1428 = vmatprep.subr.mxu0 0.0
        %1429 = vmatpush1.msra.mxu0 0.0
        %1430 = vmatprep.subr.mxu0 0.0
        %1431 = vmatpush1.msra.mxu0 0.0
        %1432 = vmatprep.subr.mxu0 0.0
        %1433 = vmatpush1.msra.mxu0 0.0
        %1434 = vmatprep.subr.mxu0 0.0
        %1435 = vmatpush1.msra.mxu0 0.0
        %1436 = vmatprep.subr.mxu0 0.0
        %1437 = vmatpush1.msra.mxu0 0.0
        %1438 = vmatprep.subr.mxu0 0.0
        %1439 = vmatpush1.msra.mxu0 0.0
        %1440 = vmatprep.subr.mxu0 0.0
        %1441 = vmatpush1.msra.mxu0 0.0
        %1442 = vmatprep.subr.mxu0 0.0
        %1443 = vmatpush1.msra.mxu0 0.0
        %1444 = vmatprep.subr.mxu0 0.0
        %1445 = vmatpush1.msra.mxu0 0.0
        %1446 = vmatprep.subr.mxu0 0.0
        %1447 = vmatpush1.msra.mxu0 0.0
        %1448 = vmatprep.subr.mxu0 0.0
        %1449 = vmatpush1.msra.mxu0 0.0
        %1450 = vmatprep.subr.mxu0 0.0
        %1451 = vmatpush1.msra.mxu0 0.0
        %1452 = vmatprep.subr.mxu0 0.0
        %1453 = vmatpush1.msra.mxu0 0.0
        %1454 = vmatprep.subr.mxu0 0.0
        %1455 = vmatpush1.msra.mxu0 0.0
        %1456 = vmatprep.subr.mxu0 0.0
        %1457 = vmatpush1.msra.mxu0 0.0
        %1458 = vmatprep.subr.mxu0 0.0
        %1459 = vmatpush1.msra.mxu0 0.0
        %1460 = vmatprep.subr.mxu0 0.0
        %1461 = vmatpush1.msra.mxu0 0.0
        %1462 = vmatprep.subr.mxu0 0.0
        %1463 = vmatpush1.msra.mxu0 0.0
        %1464 = vmatprep.subr.mxu0 0.0
        %1465 = vmatpush1.msra.mxu0 0.0
        %1466 = vmatprep.subr.mxu0 0.0
        %1467 = vmatpush1.msra.mxu0 0.0
        %1468 = vmatprep.subr.mxu0 0.0
        %1469 = vmatpush1.msra.mxu0 0.0
        %1470 = vmatprep.mubr.f32.mxu0 0.0
        %1471 = vmatmul.mubr.f32.gmra.mrb[0].mxu0 %v1231
        %v1472 = vpop.f32.mrb[0].mxu0
        %v1473 = vadd.f32 0.0, %v1472
        %v1474 = vpop.f32.mrb[0].mxu0
        %1475 = vmatprep.mubr.f32.mxu0 0.0
        %1476 = vmatmul.mubr.f32.gmra.mrb[0].mxu0 %v1234
        %v1477 = vpop.f32.mrb[0].mxu0
        %v1478 = vadd.f32 0.0, %v1477
        %v1479 = vpop.f32.mrb[0].mxu0
        %1480 = vdwg.mxu0
        %v1481 = vmax.f32 %v1395, %v1473
        %v1482 = vmax.f32 %v1396, %v1478
        %s1483 = scalar_lea.vmem %s6, 192
        %v1484 = vld [vmem:[%s1483] sm:$0xff]
        %v1485 = vld [vmem:[%s1483 + $0x8] sm:$0xff]
        %v1486 = vld [vmem:[%s1483 + $0x10] sm:$0xff]
        %v1487 = vld [vmem:[%s1483 + $0x18] sm:$0xff]
        %v1488 = vld [vmem:[%s1483 + $0x20] sm:$0xff]
        %v1489 = vld [vmem:[%s1483 + $0x28] sm:$0xff]
        %v1490 = vld [vmem:[%s1483 + $0x30] sm:$0xff]
        %v1491 = vld [vmem:[%s1483 + $0x38] sm:$0xff]
        %1492 = vmatprep.subr.mxu0 0.0
        %1493 = vmatpush1.msra.mxu0 %v1484
        %1494 = vmatprep.subr.mxu0 0.0
        %1495 = vmatpush1.msra.mxu0 %v1485
        %1496 = vmatprep.subr.mxu0 0.0
        %1497 = vmatpush1.msra.mxu0 %v1486
        %1498 = vmatprep.subr.mxu0 0.0
        %1499 = vmatpush1.msra.mxu0 %v1487
        %1500 = vmatprep.subr.mxu0 0.0
        %1501 = vmatpush1.msra.mxu0 %v1488
        %1502 = vmatprep.subr.mxu0 0.0
        %1503 = vmatpush1.msra.mxu0 %v1489
        %1504 = vmatprep.subr.mxu0 0.0
        %1505 = vmatpush1.msra.mxu0 %v1490
        %1506 = vmatprep.subr.mxu0 0.0
        %1507 = vmatpush1.msra.mxu0 %v1491
        %1508 = vmatprep.subr.mxu0 0.0
        %1509 = vmatpush1.msra.mxu0 0.0
        %1510 = vmatprep.subr.mxu0 0.0
        %1511 = vmatpush1.msra.mxu0 0.0
        %1512 = vmatprep.subr.mxu0 0.0
        %1513 = vmatpush1.msra.mxu0 0.0
        %1514 = vmatprep.subr.mxu0 0.0
        %1515 = vmatpush1.msra.mxu0 0.0
        %1516 = vmatprep.subr.mxu0 0.0
        %1517 = vmatpush1.msra.mxu0 0.0
        %1518 = vmatprep.subr.mxu0 0.0
        %1519 = vmatpush1.msra.mxu0 0.0
        %1520 = vmatprep.subr.mxu0 0.0
        %1521 = vmatpush1.msra.mxu0 0.0
        %1522 = vmatprep.subr.mxu0 0.0
        %1523 = vmatpush1.msra.mxu0 0.0
        %1524 = vmatprep.subr.mxu0 0.0
        %1525 = vmatpush1.msra.mxu0 0.0
        %1526 = vmatprep.subr.mxu0 0.0
        %1527 = vmatpush1.msra.mxu0 0.0
        %1528 = vmatprep.subr.mxu0 0.0
        %1529 = vmatpush1.msra.mxu0 0.0
        %1530 = vmatprep.subr.mxu0 0.0
        %1531 = vmatpush1.msra.mxu0 0.0
        %1532 = vmatprep.subr.mxu0 0.0
        %1533 = vmatpush1.msra.mxu0 0.0
        %1534 = vmatprep.subr.mxu0 0.0
        %1535 = vmatpush1.msra.mxu0 0.0
        %1536 = vmatprep.subr.mxu0 0.0
        %1537 = vmatpush1.msra.mxu0 0.0
        %1538 = vmatprep.subr.mxu0 0.0
        %1539 = vmatpush1.msra.mxu0 0.0
        %1540 = vmatprep.subr.mxu0 0.0
        %1541 = vmatpush1.msra.mxu0 0.0
        %1542 = vmatprep.subr.mxu0 0.0
        %1543 = vmatpush1.msra.mxu0 0.0
        %1544 = vmatprep.subr.mxu0 0.0
        %1545 = vmatpush1.msra.mxu0 0.0
        %1546 = vmatprep.subr.mxu0 0.0
        %1547 = vmatpush1.msra.mxu0 0.0
        %1548 = vmatprep.subr.mxu0 0.0
        %1549 = vmatpush1.msra.mxu0 0.0
        %1550 = vmatprep.subr.mxu0 0.0
        %1551 = vmatpush1.msra.mxu0 0.0
        %1552 = vmatprep.subr.mxu0 0.0
        %1553 = vmatpush1.msra.mxu0 0.0
        %1554 = vmatprep.subr.mxu0 0.0
        %1555 = vmatpush1.msra.mxu0 0.0
        %1556 = vmatprep.mubr.f32.mxu0 0.0
        %1557 = vmatmul.mubr.f32.gmra.mrb[0].mxu0 %v1231
        %v1558 = vpop.f32.mrb[0].mxu0
        %v1559 = vadd.f32 0.0, %v1558
        %v1560 = vpop.f32.mrb[0].mxu0
        %1561 = vmatprep.mubr.f32.mxu0 0.0
        %1562 = vmatmul.mubr.f32.gmra.mrb[0].mxu0 %v1234
        %v1563 = vpop.f32.mrb[0].mxu0
        %v1564 = vadd.f32 0.0, %v1563
        %v1565 = vpop.f32.mrb[0].mxu0
        %1566 = vdwg.mxu0
        %v1567 = vmax.f32 %v1481, %v1559
        %v1568 = vmax.f32 %v1482, %v1564
        %s1569 = scalar_lea.vmem %s1, 8
        %v1570 = vld [vmem:[%s1569] sm:$0xf]
        %v1571 = vld [vmem:[%s1569 + $0x4] sm:$0xf]
        %v1572 = vpack.c.bf16 %v1568, %v1567
        %s1573 = scalar_lea.vmem %s2, 16
        %v1574 = vld [vmem:[%s1573] sm:$0xff]
        %v1575 = vld [vmem:[%s1573 + $0x8] sm:$0xff]
        %1577 = vset.pattern.permute.xlu0 0
        %1578 = vperm.xlu0 %1577, %v1574
        %v1579 = vpop.permute.xlu0 %1578
        %1582 = vset.pattern.permute.xlu0 0
        %1583 = vperm.xlu0 %1582, %v1575
        %v1584 = vpop.permute.xlu0 %1583
        %v1588 = vunpack.c.l.b16 %v1570
        %v1589 = vunpack.c.l.b16 %v1571
        %v1590 = vpack.c.b16 %v1589, %v1588
        %v1592 = vsel %vm376, %v1590, 0
        %1594 = vmatprep.subr.bf16.mxu0 0
        %1595 = vmatpush1.bf16.msra.mxu0 %v1572
        %1596 = vmatprep.subr.bf16.mxu0 0
        %1597 = vmatpush1.bf16.msra.mxu0 0
        %1598 = vmatprep.subr.bf16.mxu0 0
        %1599 = vmatpush1.bf16.msra.mxu0 0
        %1600 = vmatprep.subr.bf16.mxu0 0
        %1601 = vmatpush1.bf16.msra.mxu0 0
        %1602 = vmatprep.subr.bf16.mxu0 0
        %1603 = vmatpush1.bf16.msra.mxu0 0
        %1604 = vmatprep.subr.bf16.mxu0 0
        %1605 = vmatpush1.bf16.msra.mxu0 0
        %1606 = vmatprep.subr.bf16.mxu0 0
        %1607 = vmatpush1.bf16.msra.mxu0 0
        %1608 = vmatprep.subr.bf16.mxu0 0
        %1609 = vmatpush1.bf16.msra.mxu0 0
        %1610 = vmatprep.subr.bf16.mxu0 0
        %1611 = vmatpush1.bf16.msra.mxu0 0
        %1612 = vmatprep.subr.bf16.mxu0 0
        %1613 = vmatpush1.bf16.msra.mxu0 0
        %1614 = vmatprep.subr.bf16.mxu0 0
        %1615 = vmatpush1.bf16.msra.mxu0 0
        %1616 = vmatprep.subr.bf16.mxu0 0
        %1617 = vmatpush1.bf16.msra.mxu0 0
        %1618 = vmatprep.subr.bf16.mxu0 0
        %1619 = vmatpush1.bf16.msra.mxu0 0
        %1620 = vmatprep.subr.bf16.mxu0 0
        %1621 = vmatpush1.bf16.msra.mxu0 0
        %1622 = vmatprep.subr.bf16.mxu0 0
        %1623 = vmatpush1.bf16.msra.mxu0 0
        %1624 = vmatprep.subr.bf16.mxu0 0
        %1625 = vmatpush1.bf16.msra.mxu0 0
        %1626 = vmatprep.mubr.bf16.mxu0 0
        %1627 = vmatmul.mubr.bf16.gmra.mrb[0].mxu0 %v1592
        %v1628 = vpop.f32.mrb[0].mxu0
        %v1629 = vadd.f32 %v1579, %v1628
        %v1630 = vpop.f32.mrb[0].mxu0
        %v1631 = vpop.f32.mrb[0].mxu0
        %v1632 = vadd.f32 %v1584, %v1631
        %v1633 = vpop.f32.mrb[0].mxu0
        %1634 = vdwg.mxu0
        %v1635 = vmax.f32 %v1629, 0.0
        %v1636 = vmax.f32 %v1632, 0.0
        %s1637 = scalar_lea.vmem %s3, 8
        %v1638 = vld [vmem:[%s1637] sm:$0xf]
        %v1639 = vld [vmem:[%s1637 + $0x4] sm:$0xf]
        %v1640 = vpack.c.bf16 %v1636, %v1635
        %v1643 = vunpack.c.l.b16 %v1638
        %v1644 = vunpack.c.l.b16 %v1639
        %v1645 = vpack.c.b16 %v1644, %v1643
        %v1647 = vsel %vm376, %v1645, 0
        %1649 = vmatprep.subr.bf16.mxu0 0
        %1650 = vmatpush1.bf16.msra.mxu0 %v1640
        %1651 = vmatprep.subr.bf16.mxu0 0
        %1652 = vmatpush1.bf16.msra.mxu0 0
        %1653 = vmatprep.subr.bf16.mxu0 0
        %1654 = vmatpush1.bf16.msra.mxu0 0
        %1655 = vmatprep.subr.bf16.mxu0 0
        %1656 = vmatpush1.bf16.msra.mxu0 0
        %1657 = vmatprep.subr.bf16.mxu0 0
        %1658 = vmatpush1.bf16.msra.mxu0 0
        %1659 = vmatprep.subr.bf16.mxu0 0
        %1660 = vmatpush1.bf16.msra.mxu0 0
        %1661 = vmatprep.subr.bf16.mxu0 0
        %1662 = vmatpush1.bf16.msra.mxu0 0
        %1663 = vmatprep.subr.bf16.mxu0 0
        %1664 = vmatpush1.bf16.msra.mxu0 0
        %1665 = vmatprep.subr.bf16.mxu0 0
        %1666 = vmatpush1.bf16.msra.mxu0 0
        %1667 = vmatprep.subr.bf16.mxu0 0
        %1668 = vmatpush1.bf16.msra.mxu0 0
        %1669 = vmatprep.subr.bf16.mxu0 0
        %1670 = vmatpush1.bf16.msra.mxu0 0
        %1671 = vmatprep.subr.bf16.mxu0 0
        %1672 = vmatpush1.bf16.msra.mxu0 0
        %1673 = vmatprep.subr.bf16.mxu0 0
        %1674 = vmatpush1.bf16.msra.mxu0 0
        %1675 = vmatprep.subr.bf16.mxu0 0
        %1676 = vmatpush1.bf16.msra.mxu0 0
        %1677 = vmatprep.subr.bf16.mxu0 0
        %1678 = vmatpush1.bf16.msra.mxu0 0
        %1679 = vmatprep.subr.bf16.mxu0 0
        %1680 = vmatpush1.bf16.msra.mxu0 0
        %1681 = vmatprep.mubr.bf16.mxu0 0
        %1682 = vmatmul.mubr.bf16.gmra.mrb[0].mxu0 %v1647
        %v1683 = vpop.f32.mrb[0].mxu0
        %v1684 = vadd.f32 0.0, %v1683
        %v1685 = vpop.f32.mrb[0].mxu0
        %v1686 = vpop.f32.mrb[0].mxu0
        %v1687 = vadd.f32 0.0, %v1686
        %v1688 = vpop.f32.mrb[0].mxu0
        %1689 = vdwg.mxu0
        %v1690 = vadd.f32 %v1567, %v1684
        %v1691 = vadd.f32 %v1568, %v1687
        %s1692 = scalar_lea.vmem %s4, 16
        %v1693 = vld [vmem:[%s1692] sm:$0xff]
        %v1694 = vld [vmem:[%s1692 + $0x8] sm:$0xff]
        %1696 = vset.pattern.permute.xlu0 0
        %1697 = vperm.xlu0 %1696, %v1693
        %v1698 = vpop.permute.xlu0 %1697
        %1701 = vset.pattern.permute.xlu0 0
        %1702 = vperm.xlu0 %1701, %v1694
        %v1703 = vpop.permute.xlu0 %1702
        %v1705 = vadd.f32 %v1690, %v1698
        %v1706 = vadd.f32 %v1691, %v1703
        %v1707 = vmax.f32 %v1705, 0.0
        %v1708 = vmax.f32 %v1706, 0.0
        %s1709 = scalar_lea.vmem %s1, 24
        %v1710 = vld [vmem:[%s1709] sm:$0xf]
        %v1711 = vld [vmem:[%s1709 + $0x4] sm:$0xf]
        %v1712 = vpack.c.bf16 %v1708, %v1707
        %s1713 = scalar_lea.vmem %s2, 48
        %v1714 = vld [vmem:[%s1713] sm:$0xff]
        %v1715 = vld [vmem:[%s1713 + $0x8] sm:$0xff]
        %1717 = vset.pattern.permute.xlu0 0
        %1718 = vperm.xlu0 %1717, %v1714
        %v1719 = vpop.permute.xlu0 %1718
        %1722 = vset.pattern.permute.xlu0 0
        %1723 = vperm.xlu0 %1722, %v1715
        %v1724 = vpop.permute.xlu0 %1723
        %v1728 = vunpack.c.l.b16 %v1710
        %v1729 = vunpack.c.l.b16 %v1711
        %v1730 = vpack.c.b16 %v1729, %v1728
        %v1732 = vsel %vm376, %v1730, 0
        %1734 = vmatprep.subr.bf16.mxu0 0
        %1735 = vmatpush1.bf16.msra.mxu0 %v1712
        %1736 = vmatprep.subr.bf16.mxu0 0
        %1737 = vmatpush1.bf16.msra.mxu0 0
        %1738 = vmatprep.subr.bf16.mxu0 0
        %1739 = vmatpush1.bf16.msra.mxu0 0
        %1740 = vmatprep.subr.bf16.mxu0 0
        %1741 = vmatpush1.bf16.msra.mxu0 0
        %1742 = vmatprep.subr.bf16.mxu0 0
        %1743 = vmatpush1.bf16.msra.mxu0 0
        %1744 = vmatprep.subr.bf16.mxu0 0
        %1745 = vmatpush1.bf16.msra.mxu0 0
        %1746 = vmatprep.subr.bf16.mxu0 0
        %1747 = vmatpush1.bf16.msra.mxu0 0
        %1748 = vmatprep.subr.bf16.mxu0 0
        %1749 = vmatpush1.bf16.msra.mxu0 0
        %1750 = vmatprep.subr.bf16.mxu0 0
        %1751 = vmatpush1.bf16.msra.mxu0 0
        %1752 = vmatprep.subr.bf16.mxu0 0
        %1753 = vmatpush1.bf16.msra.mxu0 0
        %1754 = vmatprep.subr.bf16.mxu0 0
        %1755 = vmatpush1.bf16.msra.mxu0 0
        %1756 = vmatprep.subr.bf16.mxu0 0
        %1757 = vmatpush1.bf16.msra.mxu0 0
        %1758 = vmatprep.subr.bf16.mxu0 0
        %1759 = vmatpush1.bf16.msra.mxu0 0
        %1760 = vmatprep.subr.bf16.mxu0 0
        %1761 = vmatpush1.bf16.msra.mxu0 0
        %1762 = vmatprep.subr.bf16.mxu0 0
        %1763 = vmatpush1.bf16.msra.mxu0 0
        %1764 = vmatprep.subr.bf16.mxu0 0
        %1765 = vmatpush1.bf16.msra.mxu0 0
        %1766 = vmatprep.mubr.bf16.mxu0 0
        %1767 = vmatmul.mubr.bf16.gmra.mrb[0].mxu0 %v1732
        %v1768 = vpop.f32.mrb[0].mxu0
        %v1769 = vadd.f32 %v1719, %v1768
        %v1770 = vpop.f32.mrb[0].mxu0
        %v1771 = vpop.f32.mrb[0].mxu0
        %v1772 = vadd.f32 %v1724, %v1771
        %v1773 = vpop.f32.mrb[0].mxu0
        %1774 = vdwg.mxu0
        %v1775 = vmax.f32 %v1769, 0.0
        %v1776 = vmax.f32 %v1772, 0.0
        %s1777 = scalar_lea.vmem %s3, 24
        %v1778 = vld [vmem:[%s1777] sm:$0xf]
        %v1779 = vld [vmem:[%s1777 + $0x4] sm:$0xf]
        %v1780 = vpack.c.bf16 %v1776, %v1775
        %v1783 = vunpack.c.l.b16 %v1778
        %v1784 = vunpack.c.l.b16 %v1779
        %v1785 = vpack.c.b16 %v1784, %v1783
        %v1787 = vsel %vm376, %v1785, 0
        %1789 = vmatprep.subr.bf16.mxu0 0
        %1790 = vmatpush1.bf16.msra.mxu0 %v1780
        %1791 = vmatprep.subr.bf16.mxu0 0
        %1792 = vmatpush1.bf16.msra.mxu0 0
        %1793 = vmatprep.subr.bf16.mxu0 0
        %1794 = vmatpush1.bf16.msra.mxu0 0
        %1795 = vmatprep.subr.bf16.mxu0 0
        %1796 = vmatpush1.bf16.msra.mxu0 0
        %1797 = vmatprep.subr.bf16.mxu0 0
        %1798 = vmatpush1.bf16.msra.mxu0 0
        %1799 = vmatprep.subr.bf16.mxu0 0
        %1800 = vmatpush1.bf16.msra.mxu0 0
        %1801 = vmatprep.subr.bf16.mxu0 0
        %1802 = vmatpush1.bf16.msra.mxu0 0
        %1803 = vmatprep.subr.bf16.mxu0 0
        %1804 = vmatpush1.bf16.msra.mxu0 0
        %1805 = vmatprep.subr.bf16.mxu0 0
        %1806 = vmatpush1.bf16.msra.mxu0 0
        %1807 = vmatprep.subr.bf16.mxu0 0
        %1808 = vmatpush1.bf16.msra.mxu0 0
        %1809 = vmatprep.subr.bf16.mxu0 0
        %1810 = vmatpush1.bf16.msra.mxu0 0
        %1811 = vmatprep.subr.bf16.mxu0 0
        %1812 = vmatpush1.bf16.msra.mxu0 0
        %1813 = vmatprep.subr.bf16.mxu0 0
        %1814 = vmatpush1.bf16.msra.mxu0 0
        %1815 = vmatprep.subr.bf16.mxu0 0
        %1816 = vmatpush1.bf16.msra.mxu0 0
        %1817 = vmatprep.subr.bf16.mxu0 0
        %1818 = vmatpush1.bf16.msra.mxu0 0
        %1819 = vmatprep.subr.bf16.mxu0 0
        %1820 = vmatpush1.bf16.msra.mxu0 0
        %1821 = vmatprep.mubr.bf16.mxu0 0
        %1822 = vmatmul.mubr.bf16.gmra.mrb[0].mxu0 %v1787
        %v1823 = vpop.f32.mrb[0].mxu0
        %v1824 = vadd.f32 0.0, %v1823
        %v1825 = vpop.f32.mrb[0].mxu0
        %v1826 = vpop.f32.mrb[0].mxu0
        %v1827 = vadd.f32 0.0, %v1826
        %v1828 = vpop.f32.mrb[0].mxu0
        %1829 = vdwg.mxu0
        %v1830 = vadd.f32 %v1707, %v1824
        %v1831 = vadd.f32 %v1708, %v1827
        %s1832 = scalar_lea.vmem %s4, 48
        %v1833 = vld [vmem:[%s1832] sm:$0xff]
        %v1834 = vld [vmem:[%s1832 + $0x8] sm:$0xff]
        %1836 = vset.pattern.permute.xlu0 0
        %1837 = vperm.xlu0 %1836, %v1833
        %v1838 = vpop.permute.xlu0 %1837
        %1841 = vset.pattern.permute.xlu0 0
        %1842 = vperm.xlu0 %1841, %v1834
        %v1843 = vpop.permute.xlu0 %1842
        %v1845 = vadd.f32 %v1830, %v1838
        %v1846 = vadd.f32 %v1831, %v1843
        %v1847 = vmax.f32 %v1845, 0.0
        %v1848 = vmax.f32 %v1846, 0.0
        %s1849 = scalar_lea.vmem %s1, 16
        %v1850 = vld [vmem:[%s1849] sm:$0xf]
        %v1851 = vld [vmem:[%s1849 + $0x4] sm:$0xf]
        %v1852 = vpack.c.bf16 %v1848, %v1847
        %s1853 = scalar_lea.vmem %s2, 32
        %v1854 = vld [vmem:[%s1853] sm:$0xff]
        %v1855 = vld [vmem:[%s1853 + $0x8] sm:$0xff]
        %1857 = vset.pattern.permute.xlu0 0
        %1858 = vperm.xlu0 %1857, %v1854
        %v1859 = vpop.permute.xlu0 %1858
        %1862 = vset.pattern.permute.xlu0 0
        %1863 = vperm.xlu0 %1862, %v1855
        %v1864 = vpop.permute.xlu0 %1863
        %v1868 = vunpack.c.l.b16 %v1850
        %v1869 = vunpack.c.l.b16 %v1851
        %v1870 = vpack.c.b16 %v1869, %v1868
        %v1872 = vsel %vm376, %v1870, 0
        %1874 = vmatprep.subr.bf16.mxu0 0
        %1875 = vmatpush1.bf16.msra.mxu0 %v1852
        %1876 = vmatprep.subr.bf16.mxu0 0
        %1877 = vmatpush1.bf16.msra.mxu0 0
        %1878 = vmatprep.subr.bf16.mxu0 0
        %1879 = vmatpush1.bf16.msra.mxu0 0
        %1880 = vmatprep.subr.bf16.mxu0 0
        %1881 = vmatpush1.bf16.msra.mxu0 0
        %1882 = vmatprep.subr.bf16.mxu0 0
        %1883 = vmatpush1.bf16.msra.mxu0 0
        %1884 = vmatprep.subr.bf16.mxu0 0
        %1885 = vmatpush1.bf16.msra.mxu0 0
        %1886 = vmatprep.subr.bf16.mxu0 0
        %1887 = vmatpush1.bf16.msra.mxu0 0
        %1888 = vmatprep.subr.bf16.mxu0 0
        %1889 = vmatpush1.bf16.msra.mxu0 0
        %1890 = vmatprep.subr.bf16.mxu0 0
        %1891 = vmatpush1.bf16.msra.mxu0 0
        %1892 = vmatprep.subr.bf16.mxu0 0
        %1893 = vmatpush1.bf16.msra.mxu0 0
        %1894 = vmatprep.subr.bf16.mxu0 0
        %1895 = vmatpush1.bf16.msra.mxu0 0
        %1896 = vmatprep.subr.bf16.mxu0 0
        %1897 = vmatpush1.bf16.msra.mxu0 0
        %1898 = vmatprep.subr.bf16.mxu0 0
        %1899 = vmatpush1.bf16.msra.mxu0 0
        %1900 = vmatprep.subr.bf16.mxu0 0
        %1901 = vmatpush1.bf16.msra.mxu0 0
        %1902 = vmatprep.subr.bf16.mxu0 0
        %1903 = vmatpush1.bf16.msra.mxu0 0
        %1904 = vmatprep.subr.bf16.mxu0 0
        %1905 = vmatpush1.bf16.msra.mxu0 0
        %1906 = vmatprep.mubr.bf16.mxu0 0
        %1907 = vmatmul.mubr.bf16.gmra.mrb[0].mxu0 %v1872
        %v1908 = vpop.f32.mrb[0].mxu0
        %v1909 = vadd.f32 %v1859, %v1908
        %v1910 = vpop.f32.mrb[0].mxu0
        %v1911 = vpop.f32.mrb[0].mxu0
        %v1912 = vadd.f32 %v1864, %v1911
        %v1913 = vpop.f32.mrb[0].mxu0
        %1914 = vdwg.mxu0
        %v1915 = vmax.f32 %v1909, 0.0
        %v1916 = vmax.f32 %v1912, 0.0
        %s1917 = scalar_lea.vmem %s3, 16
        %v1918 = vld [vmem:[%s1917] sm:$0xf]
        %v1919 = vld [vmem:[%s1917 + $0x4] sm:$0xf]
        %v1920 = vpack.c.bf16 %v1916, %v1915
        %v1923 = vunpack.c.l.b16 %v1918
        %v1924 = vunpack.c.l.b16 %v1919
        %v1925 = vpack.c.b16 %v1924, %v1923
        %v1927 = vsel %vm376, %v1925, 0
        %1929 = vmatprep.subr.bf16.mxu0 0
        %1930 = vmatpush1.bf16.msra.mxu0 %v1920
        %1931 = vmatprep.subr.bf16.mxu0 0
        %1932 = vmatpush1.bf16.msra.mxu0 0
        %1933 = vmatprep.subr.bf16.mxu0 0
        %1934 = vmatpush1.bf16.msra.mxu0 0
        %1935 = vmatprep.subr.bf16.mxu0 0
        %1936 = vmatpush1.bf16.msra.mxu0 0
        %1937 = vmatprep.subr.bf16.mxu0 0
        %1938 = vmatpush1.bf16.msra.mxu0 0
        %1939 = vmatprep.subr.bf16.mxu0 0
        %1940 = vmatpush1.bf16.msra.mxu0 0
        %1941 = vmatprep.subr.bf16.mxu0 0
        %1942 = vmatpush1.bf16.msra.mxu0 0
        %1943 = vmatprep.subr.bf16.mxu0 0
        %1944 = vmatpush1.bf16.msra.mxu0 0
        %1945 = vmatprep.subr.bf16.mxu0 0
        %1946 = vmatpush1.bf16.msra.mxu0 0
        %1947 = vmatprep.subr.bf16.mxu0 0
        %1948 = vmatpush1.bf16.msra.mxu0 0
        %1949 = vmatprep.subr.bf16.mxu0 0
        %1950 = vmatpush1.bf16.msra.mxu0 0
        %1951 = vmatprep.subr.bf16.mxu0 0
        %1952 = vmatpush1.bf16.msra.mxu0 0
        %1953 = vmatprep.subr.bf16.mxu0 0
        %1954 = vmatpush1.bf16.msra.mxu0 0
        %1955 = vmatprep.subr.bf16.mxu0 0
        %1956 = vmatpush1.bf16.msra.mxu0 0
        %1957 = vmatprep.subr.bf16.mxu0 0
        %1958 = vmatpush1.bf16.msra.mxu0 0
        %1959 = vmatprep.subr.bf16.mxu0 0
        %1960 = vmatpush1.bf16.msra.mxu0 0
        %1961 = vmatprep.mubr.bf16.mxu0 0
        %1962 = vmatmul.mubr.bf16.gmra.mrb[0].mxu0 %v1927
        %v1963 = vpop.f32.mrb[0].mxu0
        %v1964 = vadd.f32 0.0, %v1963
        %v1965 = vpop.f32.mrb[0].mxu0
        %v1966 = vpop.f32.mrb[0].mxu0
        %v1967 = vadd.f32 0.0, %v1966
        %v1968 = vpop.f32.mrb[0].mxu0
        %1969 = vdwg.mxu0
        %v1970 = vadd.f32 %v1847, %v1964
        %v1971 = vadd.f32 %v1848, %v1967
        %s1972 = scalar_lea.vmem %s4, 32
        %v1973 = vld [vmem:[%s1972] sm:$0xff]
        %v1974 = vld [vmem:[%s1972 + $0x8] sm:$0xff]
        %1976 = vset.pattern.permute.xlu0 0
        %1977 = vperm.xlu0 %1976, %v1973
        %v1978 = vpop.permute.xlu0 %1977
        %1981 = vset.pattern.permute.xlu0 0
        %1982 = vperm.xlu0 %1981, %v1974
        %v1983 = vpop.permute.xlu0 %1982
        %v1985 = vadd.f32 %v1970, %v1978
        %v1986 = vadd.f32 %v1971, %v1983
        %v1987 = vmax.f32 %v1985, 0.0
        %v1988 = vmax.f32 %v1986, 0.0
        %v1989 = vld [vmem:[%s8] sm:$0xff]
        %v1990 = vld [vmem:[%s8 + $0x8] sm:$0xff]
        %v1992 = vsel %vm376, %v1987, 0
        %v1995 = vsel %vm376, %v1988, 0
        %1997 = vmatprep.subr.mxu0 0.0
        %1998 = vmatpush1.msra.mxu0 %v1989
        %1999 = vmatprep.subr.mxu0 0.0
        %2000 = vmatpush1.msra.mxu0 %v1990
        %2001 = vmatprep.subr.mxu0 0.0
        %2002 = vmatpush1.msra.mxu0 0.0
        %2003 = vmatprep.subr.mxu0 0.0
        %2004 = vmatpush1.msra.mxu0 0.0
        %2005 = vmatprep.subr.mxu0 0.0
        %2006 = vmatpush1.msra.mxu0 0.0
        %2007 = vmatprep.subr.mxu0 0.0
        %2008 = vmatpush1.msra.mxu0 0.0
        %2009 = vmatprep.subr.mxu0 0.0
        %2010 = vmatpush1.msra.mxu0 0.0
        %2011 = vmatprep.subr.mxu0 0.0
        %2012 = vmatpush1.msra.mxu0 0.0
        %2013 = vmatprep.subr.mxu0 0.0
        %2014 = vmatpush1.msra.mxu0 0.0
        %2015 = vmatprep.subr.mxu0 0.0
        %2016 = vmatpush1.msra.mxu0 0.0
        %2017 = vmatprep.subr.mxu0 0.0
        %2018 = vmatpush1.msra.mxu0 0.0
        %2019 = vmatprep.subr.mxu0 0.0
        %2020 = vmatpush1.msra.mxu0 0.0
        %2021 = vmatprep.subr.mxu0 0.0
        %2022 = vmatpush1.msra.mxu0 0.0
        %2023 = vmatprep.subr.mxu0 0.0
        %2024 = vmatpush1.msra.mxu0 0.0
        %2025 = vmatprep.subr.mxu0 0.0
        %2026 = vmatpush1.msra.mxu0 0.0
        %2027 = vmatprep.subr.mxu0 0.0
        %2028 = vmatpush1.msra.mxu0 0.0
        %2029 = vmatprep.subr.mxu0 0.0
        %2030 = vmatpush1.msra.mxu0 0.0
        %2031 = vmatprep.subr.mxu0 0.0
        %2032 = vmatpush1.msra.mxu0 0.0
        %2033 = vmatprep.subr.mxu0 0.0
        %2034 = vmatpush1.msra.mxu0 0.0
        %2035 = vmatprep.subr.mxu0 0.0
        %2036 = vmatpush1.msra.mxu0 0.0
        %2037 = vmatprep.subr.mxu0 0.0
        %2038 = vmatpush1.msra.mxu0 0.0
        %2039 = vmatprep.subr.mxu0 0.0
        %2040 = vmatpush1.msra.mxu0 0.0
        %2041 = vmatprep.subr.mxu0 0.0
        %2042 = vmatpush1.msra.mxu0 0.0
        %2043 = vmatprep.subr.mxu0 0.0
        %2044 = vmatpush1.msra.mxu0 0.0
        %2045 = vmatprep.subr.mxu0 0.0
        %2046 = vmatpush1.msra.mxu0 0.0
        %2047 = vmatprep.subr.mxu0 0.0
        %2048 = vmatpush1.msra.mxu0 0.0
        %2049 = vmatprep.subr.mxu0 0.0
        %2050 = vmatpush1.msra.mxu0 0.0
        %2051 = vmatprep.subr.mxu0 0.0
        %2052 = vmatpush1.msra.mxu0 0.0
        %2053 = vmatprep.subr.mxu0 0.0
        %2054 = vmatpush1.msra.mxu0 0.0
        %2055 = vmatprep.subr.mxu0 0.0
        %2056 = vmatpush1.msra.mxu0 0.0
        %2057 = vmatprep.subr.mxu0 0.0
        %2058 = vmatpush1.msra.mxu0 0.0
        %2059 = vmatprep.subr.mxu0 0.0
        %2060 = vmatpush1.msra.mxu0 0.0
        %2061 = vmatprep.mubr.f32.mxu0 0.0
        %2062 = vmatmul.mubr.f32.gmra.mrb[0].mxu0 %v1992
        %v2063 = vpop.f32.mrb[0].mxu0
        %v2064 = vadd.f32 0.0, %v2063
        %v2065 = vpop.f32.mrb[0].mxu0
        %2066 = vmatprep.mubr.f32.mxu0 0.0
        %2067 = vmatmul.mubr.f32.gmra.mrb[0].mxu0 %v1995
        %v2068 = vpop.f32.mrb[0].mxu0
        %v2069 = vadd.f32 0.0, %v2068
        %v2070 = vpop.f32.mrb[0].mxu0
        %2071 = vdwg.mxu0
        %v2072 = vadd.f32 %v1219, %v2064
        %v2073 = vadd.f32 %v1220, %v2069
        %s2074 = scalar_lea.vmem %s1, 48
        %v2075 = vld [vmem:[%s2074] sm:$0xf]
        %v2076 = vld [vmem:[%s2074 + $0x4] sm:$0xf]
        %v2077 = vpack.c.bf16 %v2073, %v2072
        %s2078 = scalar_lea.vmem %s2, 96
        %v2079 = vld [vmem:[%s2078] sm:$0xff]
        %v2080 = vld [vmem:[%s2078 + $0x8] sm:$0xff]
        %2082 = vset.pattern.permute.xlu0 0
        %2083 = vperm.xlu0 %2082, %v2079
        %v2084 = vpop.permute.xlu0 %2083
        %2087 = vset.pattern.permute.xlu0 0
        %2088 = vperm.xlu0 %2087, %v2080
        %v2089 = vpop.permute.xlu0 %2088
        %v2093 = vunpack.c.l.b16 %v2075
        %v2094 = vunpack.c.l.b16 %v2076
        %v2095 = vpack.c.b16 %v2094, %v2093
        %v2097 = vsel %vm376, %v2095, 0
        %2099 = vmatprep.subr.bf16.mxu0 0
        %2100 = vmatpush1.bf16.msra.mxu0 %v2077
        %2101 = vmatprep.subr.bf16.mxu0 0
        %2102 = vmatpush1.bf16.msra.mxu0 0
        %2103 = vmatprep.subr.bf16.mxu0 0
        %2104 = vmatpush1.bf16.msra.mxu0 0
        %2105 = vmatprep.subr.bf16.mxu0 0
        %2106 = vmatpush1.bf16.msra.mxu0 0
        %2107 = vmatprep.subr.bf16.mxu0 0
        %2108 = vmatpush1.bf16.msra.mxu0 0
        %2109 = vmatprep.subr.bf16.mxu0 0
        %2110 = vmatpush1.bf16.msra.mxu0 0
        %2111 = vmatprep.subr.bf16.mxu0 0
        %2112 = vmatpush1.bf16.msra.mxu0 0
        %2113 = vmatprep.subr.bf16.mxu0 0
        %2114 = vmatpush1.bf16.msra.mxu0 0
        %2115 = vmatprep.subr.bf16.mxu0 0
        %2116 = vmatpush1.bf16.msra.mxu0 0
        %2117 = vmatprep.subr.bf16.mxu0 0
        %2118 = vmatpush1.bf16.msra.mxu0 0
        %2119 = vmatprep.subr.bf16.mxu0 0
        %2120 = vmatpush1.bf16.msra.mxu0 0
        %2121 = vmatprep.subr.bf16.mxu0 0
        %2122 = vmatpush1.bf16.msra.mxu0 0
        %2123 = vmatprep.subr.bf16.mxu0 0
        %2124 = vmatpush1.bf16.msra.mxu0 0
        %2125 = vmatprep.subr.bf16.mxu0 0
        %2126 = vmatpush1.bf16.msra.mxu0 0
        %2127 = vmatprep.subr.bf16.mxu0 0
        %2128 = vmatpush1.bf16.msra.mxu0 0
        %2129 = vmatprep.subr.bf16.mxu0 0
        %2130 = vmatpush1.bf16.msra.mxu0 0
        %2131 = vmatprep.mubr.bf16.mxu0 0
        %2132 = vmatmul.mubr.bf16.gmra.mrb[0].mxu0 %v2097
        %v2133 = vpop.f32.mrb[0].mxu0
        %v2134 = vadd.f32 %v2084, %v2133
        %v2135 = vpop.f32.mrb[0].mxu0
        %v2136 = vpop.f32.mrb[0].mxu0
        %v2137 = vadd.f32 %v2089, %v2136
        %v2138 = vpop.f32.mrb[0].mxu0
        %2139 = vdwg.mxu0
        %v2140 = vmax.f32 %v2134, 0.0
        %v2141 = vmax.f32 %v2137, 0.0
        %s2142 = scalar_lea.vmem %s3, 48
        %v2143 = vld [vmem:[%s2142] sm:$0xf]
        %v2144 = vld [vmem:[%s2142 + $0x4] sm:$0xf]
        %v2145 = vpack.c.bf16 %v2141, %v2140
        %v2148 = vunpack.c.l.b16 %v2143
        %v2149 = vunpack.c.l.b16 %v2144
        %v2150 = vpack.c.b16 %v2149, %v2148
        %v2152 = vsel %vm376, %v2150, 0
        %2154 = vmatprep.subr.bf16.mxu0 0
        %2155 = vmatpush1.bf16.msra.mxu0 %v2145
        %2156 = vmatprep.subr.bf16.mxu0 0
        %2157 = vmatpush1.bf16.msra.mxu0 0
        %2158 = vmatprep.subr.bf16.mxu0 0
        %2159 = vmatpush1.bf16.msra.mxu0 0
        %2160 = vmatprep.subr.bf16.mxu0 0
        %2161 = vmatpush1.bf16.msra.mxu0 0
        %2162 = vmatprep.subr.bf16.mxu0 0
        %2163 = vmatpush1.bf16.msra.mxu0 0
        %2164 = vmatprep.subr.bf16.mxu0 0
        %2165 = vmatpush1.bf16.msra.mxu0 0
        %2166 = vmatprep.subr.bf16.mxu0 0
        %2167 = vmatpush1.bf16.msra.mxu0 0
        %2168 = vmatprep.subr.bf16.mxu0 0
        %2169 = vmatpush1.bf16.msra.mxu0 0
        %2170 = vmatprep.subr.bf16.mxu0 0
        %2171 = vmatpush1.bf16.msra.mxu0 0
        %2172 = vmatprep.subr.bf16.mxu0 0
        %2173 = vmatpush1.bf16.msra.mxu0 0
        %2174 = vmatprep.subr.bf16.mxu0 0
        %2175 = vmatpush1.bf16.msra.mxu0 0
        %2176 = vmatprep.subr.bf16.mxu0 0
        %2177 = vmatpush1.bf16.msra.mxu0 0
        %2178 = vmatprep.subr.bf16.mxu0 0
        %2179 = vmatpush1.bf16.msra.mxu0 0
        %2180 = vmatprep.subr.bf16.mxu0 0
        %2181 = vmatpush1.bf16.msra.mxu0 0
        %2182 = vmatprep.subr.bf16.mxu0 0
        %2183 = vmatpush1.bf16.msra.mxu0 0
        %2184 = vmatprep.subr.bf16.mxu0 0
        %2185 = vmatpush1.bf16.msra.mxu0 0
        %2186 = vmatprep.mubr.bf16.mxu0 0
        %2187 = vmatmul.mubr.bf16.gmra.mrb[0].mxu0 %v2152
        %v2188 = vpop.f32.mrb[0].mxu0
        %v2189 = vadd.f32 0.0, %v2188
        %v2190 = vpop.f32.mrb[0].mxu0
        %v2191 = vpop.f32.mrb[0].mxu0
        %v2192 = vadd.f32 0.0, %v2191
        %v2193 = vpop.f32.mrb[0].mxu0
        %2194 = vdwg.mxu0
        %v2195 = vadd.f32 %v2072, %v2189
        %v2196 = vadd.f32 %v2073, %v2192
        %s2197 = scalar_lea.vmem %s4, 96
        %v2198 = vld [vmem:[%s2197] sm:$0xff]
        %v2199 = vld [vmem:[%s2197 + $0x8] sm:$0xff]
        %2201 = vset.pattern.permute.xlu0 0
        %2202 = vperm.xlu0 %2201, %v2198
        %v2203 = vpop.permute.xlu0 %2202
        %2206 = vset.pattern.permute.xlu0 0
        %2207 = vperm.xlu0 %2206, %v2199
        %v2208 = vpop.permute.xlu0 %2207
        %v2210 = vadd.f32 %v2195, %v2203
        %v2211 = vadd.f32 %v2196, %v2208
        %v2212 = vmax.f32 %v2210, 0.0
        %v2213 = vmax.f32 %v2211, 0.0
        %v2214 = vld [vmem:[%s7] sm:$0xff]
        %v2215 = vld [vmem:[%s7 + $0x8] sm:$0xff]
        %v2216 = vld [vmem:[%s7 + $0x10] sm:$0xff]
        %v2217 = vld [vmem:[%s7 + $0x18] sm:$0xff]
        %v2218 = vld [vmem:[%s7 + $0x20] sm:$0xff]
        %v2219 = vld [vmem:[%s7 + $0x28] sm:$0xff]
        %v2220 = vld [vmem:[%s7 + $0x30] sm:$0xff]
        %v2221 = vld [vmem:[%s7 + $0x38] sm:$0xff]
        %v2222 = vld [vmem:[%s7 + $0x40] sm:$0xff]
        %v2223 = vld [vmem:[%s7 + $0x48] sm:$0xff]
        %v2224 = vld [vmem:[%s7 + $0x50] sm:$0xff]
        %v2225 = vld [vmem:[%s7 + $0x58] sm:$0xff]
        %v2226 = vld [vmem:[%s7 + $0x60] sm:$0xff]
        %v2227 = vld [vmem:[%s7 + $0x68] sm:$0xff]
        %v2228 = vld [vmem:[%s7 + $0x70] sm:$0xff]
        %v2229 = vld [vmem:[%s7 + $0x78] sm:$0xff]
        %v2231 = vsel %vm1229, %v2212, 0
        %v2234 = vsel %vm1229, %v2213, 0
        %2236 = vmatprep.subr.mxu0 %v2215
        %2237 = vmatpush1.msra.mxu0 %v2214
        %2238 = vmatprep.subr.mxu0 %v2217
        %2239 = vmatpush1.msra.mxu0 %v2216
        %2240 = vmatprep.subr.mxu0 %v2219
        %2241 = vmatpush1.msra.mxu0 %v2218
        %2242 = vmatprep.subr.mxu0 %v2221
        %2243 = vmatpush1.msra.mxu0 %v2220
        %2244 = vmatprep.subr.mxu0 %v2223
        %2245 = vmatpush1.msra.mxu0 %v2222
        %2246 = vmatprep.subr.mxu0 %v2225
        %2247 = vmatpush1.msra.mxu0 %v2224
        %2248 = vmatprep.subr.mxu0 %v2227
        %2249 = vmatpush1.msra.mxu0 %v2226
        %2250 = vmatprep.subr.mxu0 %v2229
        %2251 = vmatpush1.msra.mxu0 %v2228
        %2252 = vmatprep.subr.mxu0 0.0
        %2253 = vmatpush1.msra.mxu0 0.0
        %2254 = vmatprep.subr.mxu0 0.0
        %2255 = vmatpush1.msra.mxu0 0.0
        %2256 = vmatprep.subr.mxu0 0.0
        %2257 = vmatpush1.msra.mxu0 0.0
        %2258 = vmatprep.subr.mxu0 0.0
        %2259 = vmatpush1.msra.mxu0 0.0
        %2260 = vmatprep.subr.mxu0 0.0
        %2261 = vmatpush1.msra.mxu0 0.0
        %2262 = vmatprep.subr.mxu0 0.0
        %2263 = vmatpush1.msra.mxu0 0.0
        %2264 = vmatprep.subr.mxu0 0.0
        %2265 = vmatpush1.msra.mxu0 0.0
        %2266 = vmatprep.subr.mxu0 0.0
        %2267 = vmatpush1.msra.mxu0 0.0
        %2268 = vmatprep.subr.mxu0 0.0
        %2269 = vmatpush1.msra.mxu0 0.0
        %2270 = vmatprep.subr.mxu0 0.0
        %2271 = vmatpush1.msra.mxu0 0.0
        %2272 = vmatprep.subr.mxu0 0.0
        %2273 = vmatpush1.msra.mxu0 0.0
        %2274 = vmatprep.subr.mxu0 0.0
        %2275 = vmatpush1.msra.mxu0 0.0
        %2276 = vmatprep.subr.mxu0 0.0
        %2277 = vmatpush1.msra.mxu0 0.0
        %2278 = vmatprep.subr.mxu0 0.0
        %2279 = vmatpush1.msra.mxu0 0.0
        %2280 = vmatprep.subr.mxu0 0.0
        %2281 = vmatpush1.msra.mxu0 0.0
        %2282 = vmatprep.subr.mxu0 0.0
        %2283 = vmatpush1.msra.mxu0 0.0
        %2284 = vmatprep.subr.mxu0 0.0
        %2285 = vmatpush1.msra.mxu0 0.0
        %2286 = vmatprep.subr.mxu0 0.0
        %2287 = vmatpush1.msra.mxu0 0.0
        %2288 = vmatprep.subr.mxu0 0.0
        %2289 = vmatpush1.msra.mxu0 0.0
        %2290 = vmatprep.subr.mxu0 0.0
        %2291 = vmatpush1.msra.mxu0 0.0
        %2292 = vmatprep.subr.mxu0 0.0
        %2293 = vmatpush1.msra.mxu0 0.0
        %2294 = vmatprep.subr.mxu0 0.0
        %2295 = vmatpush1.msra.mxu0 0.0
        %2296 = vmatprep.subr.mxu0 0.0
        %2297 = vmatpush1.msra.mxu0 0.0
        %2298 = vmatprep.subr.mxu0 0.0
        %2299 = vmatpush1.msra.mxu0 0.0
        %2300 = vmatprep.mubr.f32.mxu0 0.0
        %2301 = vmatmul.mubr.f32.gmra.mrb[0].mxu0 %v2231
        %v2302 = vpop.f32.mrb[0].mxu0
        %v2303 = vadd.f32 0.0, %v2302
        %v2304 = vpop.f32.mrb[0].mxu0
        %v2305 = vadd.f32 0.0, %v2304
        %2306 = vmatprep.mubr.f32.mxu0 0.0
        %2307 = vmatmul.mubr.f32.gmra.mrb[0].mxu0 %v2234
        %v2308 = vpop.f32.mrb[0].mxu0
        %v2309 = vadd.f32 0.0, %v2308
        %v2310 = vpop.f32.mrb[0].mxu0
        %v2311 = vadd.f32 0.0, %v2310
        %2312 = vdwg.mxu0
        %v2313 = vadd.f32 %v504, %v2303
        %v2314 = vadd.f32 %v505, %v2305
        %v2315 = vadd.f32 %v506, %v2309
        %v2316 = vadd.f32 %v507, %v2311
        %2317 = vst [vmem:[%s347] sm:$0xff] %v2313
        %2318 = vst [vmem:[%s347 + $0x8] sm:$0xff] %v2314
        %2319 = vst [vmem:[%s347 + $0x10] sm:$0xff] %v2315
        %2320 = vst [vmem:[%s347 + $0x18] sm:$0xff] %v2316
        %p2321 = scmp.lt.s32.totalorder %s21, 1
        %s2322 = scalar_select %p2321, %s21, 1
        %s2323 = smul.addr %s2322, 4
        %s2324 = smul.addr %s2323, 8
        %s2325 = scalar_lea.vmem %s9, %s2324
        // Predicated region
        $region61: #{hourglass_forward.1} parent=55 // pred_check
          %p2326 = pneg %p233
        $region62: #{hourglass_forward.1} parent=55 // pred_check_branch
          %2328 = sbr.rel (%p2326) target = $region64
        $region63: #{hourglass_forward.1} parent=55 // pred_region
          _
        $region64: #{hourglass_forward.1} parent=55 // pred_fallthru
          _
      $region56: #{hourglass_forward.1} parent=5 // pred_fallthru
        _
      %p2329 = scmp.le.s32.totalorder 2, %s16
      // Predicated region
      $region65: #{hourglass_forward.1} parent=5 // pred_check
        %p2330 = pneg %p2329
      $region66: #{hourglass_forward.1} parent=5 // pred_check_branch
        %2332 = sbr.rel (%p2330) target = $region68
      $region67: #{hourglass_forward.1} parent=5 // pred_region
        %s2333 = ssub.s32 %s16, 2
        // Predicated region
        $region69: #{hourglass_forward.1} parent=67 // pred_check
          %p2334 = pneg %p239
        $region70: #{hourglass_forward.1} parent=67 // pred_check_branch
          %2336 = sbr.rel (%p2334) target = $region72
        $region71: #{hourglass_forward.1} parent=67 // pred_region
          %p2337 = scmp.lt.s32.totalorder %s22, 1
          %s2338 = scalar_select %p2337, %s22, 1
          %s2339 = smul.addr %s2338, 4
          %s2340 = smul.addr %s2339, 8
          %s2341 = scalar_lea.vmem %s9, %s2340
        $region72: #{hourglass_forward.1} parent=67 // pred_fallthru
          _
      $region68: #{hourglass_forward.1} parent=5 // pred_fallthru
        _
    $region6: #{hourglass_forward.1} parent=1 // loop_footer
      %s20 = sadd.s32 1, %s16
    $region7: #{hourglass_forward.1} parent=1 // loop_footer_branch
      %15 = sbr.rel target = $region3
    $region8: #{hourglass_forward.1} parent=1 // loop_exit
      _
    %2342 = vsyncpa [#allocation3], 1
    %s2343 = scalar_lea.sflag [#allocation3], 1
    %2344 = vsyncpa %s2343, 1

</llo_original>
